<compile_context>
chip_gen: v5e
topology: v5e:2x2
jax: 0.10.0
libtpu: 0.0.40
codegen_flags: <defaults>
</compile_context>

<pallas_src>
import functools

import jax
import jax.numpy as jnp
from jax import lax
from jax.experimental import pallas as pl
from jax.experimental.pallas import tpu as pltpu

EPS = 1e-4  # matches l2normalize(v, eps=0.0001)


def _round_up(a, b):
    return ((a + b - 1) // b) * b


# ----------------------------- Pallas kernels -----------------------------

def _sigma_kernel(w_ref, wt_ref, wp_ref, u_ref, sigma_ref, ws_ref, *,
                  power_iterations):
    """Power iteration -> sigma, and emit the spectrally-normalized weight.

    w_ref:     (Cout, K)          f32  flattened conv weight (tiny, VMEM resident)
    wt_ref:    (K, Cout)          f32  same weight, pre-transposed (avoids an
                                       in-kernel transposed matmul)
    wp_ref:    (kh*kw, Cout, Cin) f32  tap-major layout consumed by the conv kernel
    u_ref:     (1, Cout)          f32
    sigma_ref: (1, 1)             f32  out
    ws_ref:    (kh*kw, Cout, Cin) f32  out: wp / sigma
    """
    w = w_ref[...]
    wt = wt_ref[...]
    u = u_ref[...]
    wv = None
    for _ in range(power_iterations):  # static unroll (python int)
        v = jnp.dot(u, w, preferred_element_type=jnp.float32,
                    precision=lax.Precision.HIGHEST)                 # (1, K)
        v = v / (jnp.sqrt(jnp.sum(v * v, keepdims=True)) + EPS)
        wv = jnp.dot(v, wt, preferred_element_type=jnp.float32,
                     precision=lax.Precision.HIGHEST)                # (1, Cout)
        u = wv / (jnp.sqrt(jnp.sum(wv * wv, keepdims=True)) + EPS)
    sigma_ref[...] = jnp.sum(u * wv, keepdims=True)                  # (1, 1)
    # Fold 1/sigma into the weight once; the streaming conv kernel only reads it.
    ws_ref[...] = wp_ref[...] * (1.0 / jnp.sum(u * wv))


def _conv_kernel(ws_ref, xm_ref, xh_ref, b_ref, o_ref, *, kh, kw, W):
    """Direct conv over flattened pixels: kh*kw shifted (Cout,Cin)@(Cin,tm) matmuls.

    ws_ref: (kh*kw, Cout, Cin) f32  resident, already divided by sigma
    xm_ref: (Cin, tm)          f32  main window of the zero-padded flat image
    xh_ref: (Cin, Hb)          f32  halo: the Hb elements following the window
    b_ref:  (Cout, 1)          f32  resident
    o_ref:  (Cout, tm)         bf16 lane-dense output tile
    """
    tm = xm_ref.shape[1]
    Cout = ws_ref.shape[1]
    pw = (kw - 1) // 2

    # main window + halo -> every shift s in [0, (kh-1)*W + kw-1] is in range
    xfull = jnp.concatenate([xm_ref[...], xh_ref[...]], axis=-1)     # (Cin, tm+Hb)

    # Column index of every output pixel in this tile -> masks for the kw taps.
    # Row (height) boundaries need no mask: they land in the zero padding.
    pos = pl.program_id(1) * tm + lax.broadcasted_iota(jnp.int32, (1, tm), 1)
    col = pos % W
    col_masks = []
    for dw in range(kw):
        c = col + (dw - pw)
        col_masks.append(((c >= 0) & (c < W)).astype(jnp.float32))   # (1, tm)

    acc = jnp.zeros((Cout, tm), jnp.float32)
    for dh in range(kh):
        for dw in range(kw):
            s = dh * W + dw
            xs = xfull[:, s:s + tm]                                  # (Cin, tm)
            if dw != pw:                       # center column never wraps
                xs = xs * col_masks[dw]
            acc = acc + jnp.dot(ws_ref[dh * kw + dw], xs,
                                preferred_element_type=jnp.float32)
    o_ref[...] = (acc + b_ref[...]).astype(o_ref.dtype)


# ------------------------------- wrapper ----------------------------------

def spectral_norm_conv2d(x, w_bar, bias, u, *, power_iterations=1,
                         vmem_budget_bytes=8 * 1024 * 1024):
    """SpectralNorm(Conv2d) forward. x: (N,C,H,W) NCHW, w_bar: (Cout,Cin,kh,kw)."""
    N, C, H, W = x.shape
    Cout, Cin, kh, kw = w_bar.shape
    assert C == Cin
    assert power_iterations >= 1, "power_iterations must be >= 1"
    assert kh % 2 == 1 and kw % 2 == 1, "odd kernel sizes assumed for 'same' padding"
    ph, pw = kh // 2, kw // 2
    K = Cin * kh * kw
    khw = kh * kw

    w2d = w_bar.reshape(Cout, K).astype(jnp.float32)
    w2d_t = jnp.transpose(w2d)                                   # (K, Cout), tiny
    # Tap-major layout: w_perm[dh*kw+dw, co, ci] = w_bar[co, ci, dh, dw]
    w_perm = jnp.transpose(w_bar.astype(jnp.float32),
                           (2, 3, 0, 1)).reshape(khw, Cout, Cin)
    u2d = u.reshape(1, Cout).astype(jnp.float32)

    # --- kernel 1: power iteration -> sigma, and tap-major w/sigma ---
    sigma, w_scaled = pl.pallas_call(
        functools.partial(_sigma_kernel, power_iterations=power_iterations),
        out_shape=(jax.ShapeDtypeStruct((1, 1), jnp.float32),
                   jax.ShapeDtypeStruct((khw, Cout, Cin), jnp.float32)),
    )(w2d, w2d_t, w_perm, u2d)

    # --- geometry of the flattened-pixel conv ---
    HWo = H * W
    smax = (kh - 1) * W + (kw - 1)            # largest in-kernel shift
    Hb = _round_up(max(smax, 1), 128)         # halo block, lane aligned

    # tm: as large as the VMEM budget allows (double-buffered f32 x tile +
    # bf16 out tile), capped to the image, multiple of the halo block.
    per_lane = 2 * (Cin * 4 + Cout * 2)
    tm = vmem_budget_bytes // per_lane
    tm = min(tm, _round_up(HWo, 128))
    tm = min(tm, 8 * 1024)
    if N == 1:                                # keep >=2 grid steps for v7x's 2 TCs
        tm = min(tm, max(Hb, _round_up(max(HWo // 2, 1), 128)))
    tm = max(Hb, (tm // Hb) * Hb)

    HWp = _round_up(HWo, tm)
    nT = HWp // tm

    # Zero-pad the flattened image: `lead` zeros in front make every tap shift
    # non-negative; the tail covers the bottom rows, any output padding and the
    # final halo block.  (Padded output pixels compute bias-only junk and are
    # sliced off below -- keep that coupling if this layout changes.)
    lead = ph * W + pw
    Lpad = nT * tm + Hb
    xflat = x.reshape(N, Cin, HWo).astype(jnp.float32)
    xpad = jnp.pad(xflat, ((0, 0), (0, 0), (lead, Lpad - HWo - lead)))

    b2d = bias.reshape(Cout, 1).astype(jnp.float32)

    grid = (N, nT)
    cost = pl.CostEstimate(
        flops=2 * N * HWp * K * Cout,
        transcendentals=0,
        bytes_accessed=(N * Cin * (Lpad + nT * Hb) * 4     # x stream + halo rereads
                        + khw * Cout * Cin * 4 + Cout * 4  # weight + bias
                        + N * Cout * HWp * 2),             # bf16 output
    )

    # --- kernel 2: direct conv, bias fused, bf16 output ---
    # TODO(synk): optional fp8 activation stream on v7x if the accuracy budget allows.
    yt = pl.pallas_call(
        functools.partial(_conv_kernel, kh=kh, kw=kw, W=W),
        out_shape=jax.ShapeDtypeStruct((N, Cout, HWp), jnp.bfloat16),
        grid=grid,
        in_specs=[
            pl.BlockSpec((khw, Cout, Cin), lambda n, j: (0, 0, 0)),   # w/sigma (resident)
            pl.BlockSpec((None, Cin, tm), lambda n, j: (n, 0, j)),    # x main window
            pl.BlockSpec((None, Cin, Hb),                             # x halo window
                         lambda n, j: (n, 0, (j + 1) * (tm // Hb))),
            pl.BlockSpec((Cout, 1), lambda n, j: (0, 0)),             # bias (resident)
        ],
        out_specs=pl.BlockSpec((None, Cout, tm), lambda n, j: (n, 0, j)),
        compiler_params=pltpu.CompilerParams(
            dimension_semantics=("parallel", "parallel"),
            vmem_limit_bytes=32 * 1024 * 1024,
        ),
        cost_estimate=cost,
    )(w_scaled, xpad, xpad, b2d)

    if HWp != HWo:
        yt = yt[:, :, :HWo]
    y = yt.reshape(N, Cout, H, W)              # free view when HWp == HWo
    return y, sigma[0, 0]


# ------------------------------ reference ----------------------------------

def _reference(x, w_bar, bias, u, power_iterations=1):
    height = w_bar.shape[0]
    w2d = w_bar.reshape(height, -1)
    uu = u
    wv = None
    for _ in range(power_iterations):
        v = w2d.T @ uu
        v = v / (jnp.linalg.norm(v) + EPS)
        wv = w2d @ v
        uu = wv / (jnp.linalg.norm(wv) + EPS)
    sigma = uu @ wv
    wn = w_bar / sigma
    y = lax.conv_general_dilated(
        x, wn, window_strides=(1, 1), padding='SAME',
        dimension_numbers=('NCHW', 'OIHW', 'NCHW'))
    return y + bias.reshape(1, -1, 1, 1), sigma


# -------------------------------- main --------------------------------------

if __name__ == "__main__":
    key = jax.random.PRNGKey(0)
    kx, kwt, kb, ku = jax.random.split(key, 4)

    N, Cin, H, W = 2, 4, 16, 16
    Cout, kh, kw_ = 8, 3, 3

    x = jax.random.normal(kx, (N, Cin, H, W), dtype=jnp.float32)
    w_bar = jax.random.normal(kwt, (Cout, Cin, kh, kw_), dtype=jnp.float32) * 0.1
    bias = jax.random.normal(kb, (Cout,), dtype=jnp.float32) * 0.1
    u0 = jax.random.normal(ku, (Cout,), dtype=jnp.float32)
    u0 = u0 / (jnp.linalg.norm(u0) + EPS)   # l2normalize(u) as in _make_params

    fwd = jax.jit(functools.partial(spectral_norm_conv2d, power_iterations=1))
    y, sigma = fwd(x, w_bar, bias, u0)
    y = jax.block_until_ready(y)

    y_ref, sigma_ref = _reference(x, w_bar, bias, u0, power_iterations=1)
    # sigma / power iteration computed in f32 (HIGHEST matmul precision requested).
    assert jnp.allclose(sigma, sigma_ref, rtol=5e-3, atol=5e-3), (sigma, sigma_ref)
    # conv accumulates in f32 but stores bf16 -> bf16-level tolerance.
    err = float(jnp.max(jnp.abs(y.astype(jnp.float32) - y_ref)))
    assert jnp.allclose(y.astype(jnp.float32), y_ref, rtol=2e-2, atol=2e-2), err

    print("KERNEL_OK")
</pallas_src>

<mosaic_0001>
module attributes {stable_mosaic.version = 11 : i64} {
  func.func @_sigma_kernel(%arg0: memref<8x36xf32, #tpu.memory_space<vmem>>, %arg1: memref<36x8xf32, #tpu.memory_space<vmem>>, %arg2: memref<9x8x4xf32, #tpu.memory_space<vmem>>, %arg3: memref<1x8xf32, #tpu.memory_space<vmem>>, %arg4: memref<1x1xf32, #tpu.memory_space<vmem>>, %arg5: memref<9x8x4xf32, #tpu.memory_space<vmem>>) attributes {dimension_semantics = [], scalar_prefetch = 0 : i64, scratch_operands = 0 : i64, tpu.core_type = #tpu.core_type<tc>} {
    %c0 = arith.constant 0 : index
    %c0_0 = arith.constant 0 : index
    %0 = vector.load %arg0[%c0, %c0_0] : memref<8x36xf32, #tpu.memory_space<vmem>>, vector<8x36xf32>
    %c0_1 = arith.constant 0 : index
    %c0_2 = arith.constant 0 : index
    %1 = vector.load %arg1[%c0_1, %c0_2] : memref<36x8xf32, #tpu.memory_space<vmem>>, vector<36x8xf32>
    %c0_3 = arith.constant 0 : index
    %c0_4 = arith.constant 0 : index
    %2 = vector.load %arg3[%c0_3, %c0_4] : memref<1x8xf32, #tpu.memory_space<vmem>>, vector<1x8xf32>
    %cst = arith.constant dense<0.000000e+00> : vector<1x36xf32>
    %3 = tpu.matmul %2, %0, %cst {dimension_numbers = #tpu.dot_dimension_numbers<[1], [0], [0], [1], [0, 0, 1, 1], [], []>, precision = #tpu.contract_precision<fp32>} : vector<1x8xf32>, vector<8x36xf32>, vector<1x36xf32> -> vector<1x36xf32>
    %4 = arith.mulf %3, %3 : vector<1x36xf32>
    %5 = vector.shape_cast %4 : vector<1x36xf32> to vector<1x1x36xf32>
    %cst_5 = arith.constant dense<0.000000e+00> : vector<1xf32>
    %6 = vector.multi_reduction <add>, %5, %cst_5 [1, 2] : vector<1x1x36xf32> to vector<1xf32>
    %7 = vector.shape_cast %6 : vector<1xf32> to vector<1x1x1xf32>
    %8 = vector.extract %7[0, 0, 0] : f32 from vector<1x1x1xf32>
    %9 = vector.broadcast %8 : f32 to vector<1x1xf32>
    %10 = math.sqrt %9 : vector<1x1xf32>
    %cst_6 = arith.constant 9.99999974E-5 : f32
    %11 = vector.broadcast %cst_6 : f32 to vector<1x1xf32>
    %12 = arith.addf %10, %11 : vector<1x1xf32>
    %13 = vector.broadcast %12 : vector<1x1xf32> to vector<1x36xf32>
    %14 = arith.divf %3, %13 : vector<1x36xf32>
    %cst_7 = arith.constant dense<0.000000e+00> : vector<1x8xf32>
    %15 = tpu.matmul %14, %1, %cst_7 {dimension_numbers = #tpu.dot_dimension_numbers<[1], [0], [0], [1], [0, 0, 1, 1], [], []>, precision = #tpu.contract_precision<fp32>} : vector<1x36xf32>, vector<36x8xf32>, vector<1x8xf32> -> vector<1x8xf32>
    %16 = arith.mulf %15, %15 : vector<1x8xf32>
    %17 = vector.shape_cast %16 : vector<1x8xf32> to vector<1x1x8xf32>
    %cst_8 = arith.constant dense<0.000000e+00> : vector<1xf32>
    %18 = vector.multi_reduction <add>, %17, %cst_8 [1, 2] : vector<1x1x8xf32> to vector<1xf32>
    %19 = vector.shape_cast %18 : vector<1xf32> to vector<1x1x1xf32>
    %20 = vector.extract %19[0, 0, 0] : f32 from vector<1x1x1xf32>
    %21 = vector.broadcast %20 : f32 to vector<1x1xf32>
    %22 = math.sqrt %21 : vector<1x1xf32>
    %cst_9 = arith.constant 9.99999974E-5 : f32
    %23 = vector.broadcast %cst_9 : f32 to vector<1x1xf32>
    %24 = arith.addf %22, %23 : vector<1x1xf32>
    %25 = vector.broadcast %24 : vector<1x1xf32> to vector<1x8xf32>
    %26 = arith.divf %15, %25 : vector<1x8xf32>
    %27 = arith.mulf %26, %15 : vector<1x8xf32>
    %28 = vector.shape_cast %27 : vector<1x8xf32> to vector<1x1x8xf32>
    %cst_10 = arith.constant dense<0.000000e+00> : vector<1xf32>
    %29 = vector.multi_reduction <add>, %28, %cst_10 [1, 2] : vector<1x1x8xf32> to vector<1xf32>
    %30 = vector.shape_cast %29 : vector<1xf32> to vector<1x1x1xf32>
    %31 = vector.extract %30[0, 0, 0] : f32 from vector<1x1x1xf32>
    %32 = vector.broadcast %31 : f32 to vector<1x1xf32>
    %c0_11 = arith.constant 0 : index
    %c0_12 = arith.constant 0 : index
    %33 = vector.load %arg4[%c0_11, %c0_12] : memref<1x1xf32, #tpu.memory_space<vmem>>, vector<1x1xf32>
    tpu.vector_store %arg4[%c0_11, %c0_12], %32 {strides = array<i32>} : memref<1x1xf32, #tpu.memory_space<vmem>>, vector<1x1xf32>,
    %c0_13 = arith.constant 0 : index
    %c0_14 = arith.constant 0 : index
    %c0_15 = arith.constant 0 : index
    %34 = vector.load %arg2[%c0_13, %c0_14, %c0_15] : memref<9x8x4xf32, #tpu.memory_space<vmem>>, vector<9x8x4xf32>
    %35 = arith.mulf %26, %15 : vector<1x8xf32>
    %36 = vector.shape_cast %35 : vector<1x8xf32> to vector<1x1x8xf32>
    %cst_16 = arith.constant dense<0.000000e+00> : vector<1xf32>
    %37 = vector.multi_reduction <add>, %36, %cst_16 [1, 2] : vector<1x1x8xf32> to vector<1xf32>
    %38 = vector.shape_cast %37 : vector<1xf32> to vector<1x1x1xf32>
    %39 = vector.extract %38[0, 0, 0] : f32 from vector<1x1x1xf32>
    %cst_17 = arith.constant 1.000000e+00 : f32
    %40 = arith.divf %cst_17, %39 : f32
    %41 = vector.broadcast %40 : f32 to vector<9x8x4xf32>
    %42 = arith.mulf %34, %41 : vector<9x8x4xf32>
    %c0_18 = arith.constant 0 : index
    %c0_19 = arith.constant 0 : index
    %c0_20 = arith.constant 0 : index
    %43 = vector.load %arg5[%c0_18, %c0_19, %c0_20] : memref<9x8x4xf32, #tpu.memory_space<vmem>>, vector<9x8x4xf32>
    tpu.vector_store %arg5[%c0_18, %c0_19, %c0_20], %42 {strides = array<i32>} : memref<9x8x4xf32, #tpu.memory_space<vmem>>, vector<9x8x4xf32>,
    return
  }
}

module attributes {stable_mosaic.version = 11 : i64} {
  func.func @_conv_kernel(%arg0: i32, %arg1: i32, %arg2: memref<9x8x4xf32, #tpu.memory_space<vmem>>, %arg3: memref<1x4x256xf32, #tpu.memory_space<vmem>>, %arg4: memref<1x4x128xf32, #tpu.memory_space<vmem>>, %arg5: memref<8x1xf32, #tpu.memory_space<vmem>>, %arg6: memref<1x8x256xbf16, #tpu.memory_space<vmem>>) attributes {dimension_semantics = [#tpu.dimension_semantics<parallel>, #tpu.dimension_semantics<parallel>], iteration_bounds = array<i64: 2, 1>, scalar_prefetch = 0 : i64, scratch_operands = 0 : i64, tpu.core_type = #tpu.core_type<tc>, window_params = [{pipeline_mode = #tpu.pipeline_mode<synchronous>, transform_indices = @transform_0, window_bounds = array<i64: 9, 8, 4>}, {transform_indices = @transform_1, window_bounds = array<i64: 1, 4, 256>}, {transform_indices = @transform_2, window_bounds = array<i64: 1, 4, 128>}, {pipeline_mode = #tpu.pipeline_mode<synchronous>, transform_indices = @transform_3, window_bounds = array<i64: 8, 1>}, {transform_indices = @transform_4, window_bounds = array<i64: 1, 8, 256>}]} {
    %c0 = arith.constant 0 : index
    %c0_0 = arith.constant 0 : index
    %c0_1 = arith.constant 0 : index
    %0 = vector.load %arg3[%c0, %c0_0, %c0_1] : memref<1x4x256xf32, #tpu.memory_space<vmem>>, vector<1x4x256xf32>
    %1 = vector.shape_cast %0 : vector<1x4x256xf32> to vector<4x256xf32>
    %c0_2 = arith.constant 0 : index
    %c0_3 = arith.constant 0 : index
    %c0_4 = arith.constant 0 : index
    %2 = vector.load %arg4[%c0_2, %c0_3, %c0_4] : memref<1x4x128xf32, #tpu.memory_space<vmem>>, vector<1x4x128xf32>
    %3 = vector.shape_cast %2 : vector<1x4x128xf32> to vector<4x128xf32>
    %4 = tpu.concatenate %1, %3 in 1 : vector<4x256xf32>, vector<4x128xf32> -> vector<4x384xf32>
    %c256_i32 = arith.constant 256 : i32
    %5 = arith.muli %arg1, %c256_i32 : i32
    %6 = tpu.iota {dimensions = array<i32: 1>} : vector<1x256xi32>
    %7 = vector.broadcast %5 : i32 to vector<1x256xi32>
    %8 = arith.addi %7, %6 : vector<1x256xi32>
    %c16_i32 = arith.constant 16 : i32
    %c0_i32 = arith.constant 0 : i32
    %9 = arith.cmpi eq, %c16_i32, %c0_i32 : i32
    %c1_i32 = arith.constant 1 : i32
    %10 = arith.select %9, %c1_i32, %c16_i32 : i32
    %11 = vector.broadcast %10 : i32 to vector<1x256xi32>
    %12 = arith.remsi %8, %11 : vector<1x256xi32>
    %c0_i32_5 = arith.constant 0 : i32
    %13 = vector.broadcast %c0_i32_5 : i32 to vector<1x256xi32>
    %14 = arith.cmpi ne, %12, %13 : vector<1x256xi32>
    %c0_i32_6 = arith.constant 0 : i32
    %15 = vector.broadcast %c0_i32_6 : i32 to vector<1x256xi32>
    %16 = arith.cmpi slt, %12, %15 : vector<1x256xi32>
    %c0_i32_7 = arith.constant 0 : i32
    %17 = arith.cmpi slt, %10, %c0_i32_7 : i32
    %18 = vector.broadcast %17 : i1 to vector<1x256xi1>
    %19 = vector.broadcast %18 : vector<1x256xi1> to vector<1x256xi1>
    %20 = arith.xori %16, %19 : vector<1x256xi1>
    %21 = arith.andi %20, %14 : vector<1x256xi1>
    %22 = vector.broadcast %10 : i32 to vector<1x256xi32>
    %23 = arith.addi %12, %22 : vector<1x256xi32>
    %24 = arith.select %21, %23, %12 : vector<1x256xi1>, vector<1x256xi32>
    %c-1_i32 = arith.constant -1 : i32
    %25 = vector.broadcast %c-1_i32 : i32 to vector<1x256xi32>
    %26 = arith.addi %24, %25 : vector<1x256xi32>
    %c0_i32_8 = arith.constant 0 : i32
    %27 = vector.broadcast %c0_i32_8 : i32 to vector<1x256xi32>
    %28 = arith.cmpi sge, %26, %27 : vector<1x256xi32>
    %c16_i32_9 = arith.constant 16 : i32
    %29 = vector.broadcast %c16_i32_9 : i32 to vector<1x256xi32>
    %30 = arith.cmpi slt, %26, %29 : vector<1x256xi32>
    %31 = arith.andi %28, %30 : vector<1x256xi1>
    %32 = arith.extui %31 : vector<1x256xi1> to vector<1x256xi32>
    %33 = arith.sitofp %32 : vector<1x256xi32> to vector<1x256xf32>
    %c1_i32_10 = arith.constant 1 : i32
    %34 = vector.broadcast %c1_i32_10 : i32 to vector<1x256xi32>
    %35 = arith.addi %24, %34 : vector<1x256xi32>
    %c0_i32_11 = arith.constant 0 : i32
    %36 = vector.broadcast %c0_i32_11 : i32 to vector<1x256xi32>
    %37 = arith.cmpi sge, %35, %36 : vector<1x256xi32>
    %c16_i32_12 = arith.constant 16 : i32
    %38 = vector.broadcast %c16_i32_12 : i32 to vector<1x256xi32>
    %39 = arith.cmpi slt, %35, %38 : vector<1x256xi32>
    %40 = arith.andi %37, %39 : vector<1x256xi1>
    %41 = arith.extui %40 : vector<1x256xi1> to vector<1x256xi32>
    %42 = arith.sitofp %41 : vector<1x256xi32> to vector<1x256xf32>
    %cst = arith.constant 0.000000e+00 : f32
    %43 = vector.broadcast %cst : f32 to vector<8x256xf32>
    %44 = vector.extract_strided_slice %4 {offsets = [0, 0], sizes = [4, 256], strides = [1, 1]} : vector<4x384xf32> to vector<4x256xf32>
    %45 = vector.broadcast %33 : vector<1x256xf32> to vector<4x256xf32>
    %46 = arith.mulf %44, %45 : vector<4x256xf32>
    %c0_13 = arith.constant 0 : index
    %c0_14 = arith.constant 0 : index
    %c0_15 = arith.constant 0 : index
    %47 = vector.load %arg2[%c0_13, %c0_14, %c0_15] : memref<9x8x4xf32, #tpu.memory_space<vmem>>, vector<1x8x4xf32>
    %48 = vector.shape_cast %47 : vector<1x8x4xf32> to vector<8x4xf32>
    %cst_16 = arith.constant dense<0.000000e+00> : vector<8x256xf32>
    %49 = tpu.matmul %48, %46, %cst_16 {dimension_numbers = #tpu.dot_dimension_numbers<[1], [0], [0], [1], [0, 0, 1, 1], [], []>} : vector<8x4xf32>, vector<4x256xf32>, vector<8x256xf32> -> vector<8x256xf32>
    %50 = arith.addf %43, %49 : vector<8x256xf32>
    %51 = vector.extract_strided_slice %4 {offsets = [0, 1], sizes = [4, 256], strides = [1, 1]} : vector<4x384xf32> to vector<4x256xf32>
    %c1 = arith.constant 1 : index
    %c0_17 = arith.constant 0 : index
    %c0_18 = arith.constant 0 : index
    %52 = vector.load %arg2[%c1, %c0_17, %c0_18] : memref<9x8x4xf32, #tpu.memory_space<vmem>>, vector<1x8x4xf32>
    %53 = vector.shape_cast %52 : vector<1x8x4xf32> to vector<8x4xf32>
    %cst_19 = arith.constant dense<0.000000e+00> : vector<8x256xf32>
    %54 = tpu.matmul %53, %51, %cst_19 {dimension_numbers = #tpu.dot_dimension_numbers<[1], [0], [0], [1], [0, 0, 1, 1], [], []>} : vector<8x4xf32>, vector<4x256xf32>, vector<8x256xf32> -> vector<8x256xf32>
    %55 = arith.addf %50, %54 : vector<8x256xf32>
    %56 = vector.extract_strided_slice %4 {offsets = [0, 2], sizes = [4, 256], strides = [1, 1]} : vector<4x384xf32> to vector<4x256xf32>
    %57 = vector.broadcast %42 : vector<1x256xf32> to vector<4x256xf32>
    %58 = arith.mulf %56, %57 : vector<4x256xf32>
    %c2 = arith.constant 2 : index
    %c0_20 = arith.constant 0 : index
    %c0_21 = arith.constant 0 : index
    %59 = vector.load %arg2[%c2, %c0_20, %c0_21] : memref<9x8x4xf32, #tpu.memory_space<vmem>>, vector<1x8x4xf32>
    %60 = vector.shape_cast %59 : vector<1x8x4xf32> to vector<8x4xf32>
    %cst_22 = arith.constant dense<0.000000e+00> : vector<8x256xf32>
    %61 = tpu.matmul %60, %58, %cst_22 {dimension_numbers = #tpu.dot_dimension_numbers<[1], [0], [0], [1], [0, 0, 1, 1], [], []>} : vector<8x4xf32>, vector<4x256xf32>, vector<8x256xf32> -> vector<8x256xf32>
    %62 = arith.addf %55, %61 : vector<8x256xf32>
    %63 = vector.extract_strided_slice %4 {offsets = [0, 16], sizes = [4, 256], strides = [1, 1]} : vector<4x384xf32> to vector<4x256xf32>
    %64 = vector.broadcast %33 : vector<1x256xf32> to vector<4x256xf32>
    %65 = arith.mulf %63, %64 : vector<4x256xf32>
    %c3 = arith.constant 3 : index
    %c0_23 = arith.constant 0 : index
    %c0_24 = arith.constant 0 : index
    %66 = vector.load %arg2[%c3, %c0_23, %c0_24] : memref<9x8x4xf32, #tpu.memory_space<vmem>>, vector<1x8x4xf32>
    %67 = vector.shape_cast %66 : vector<1x8x4xf32> to vector<8x4xf32>
    %cst_25 = arith.constant dense<0.000000e+00> : vector<8x256xf32>
    %68 = tpu.matmul %67, %65, %cst_25 {dimension_numbers = #tpu.dot_dimension_numbers<[1], [0], [0], [1], [0, 0, 1, 1], [], []>} : vector<8x4xf32>, vector<4x256xf32>, vector<8x256xf32> -> vector<8x256xf32>
    %69 = arith.addf %62, %68 : vector<8x256xf32>
    %70 = vector.extract_strided_slice %4 {offsets = [0, 17], sizes = [4, 256], strides = [1, 1]} : vector<4x384xf32> to vector<4x256xf32>
    %c4 = arith.constant 4 : index
    %c0_26 = arith.constant 0 : index
    %c0_27 = arith.constant 0 : index
    %71 = vector.load %arg2[%c4, %c0_26, %c0_27] : memref<9x8x4xf32, #tpu.memory_space<vmem>>, vector<1x8x4xf32>
    %72 = vector.shape_cast %71 : vector<1x8x4xf32> to vector<8x4xf32>
    %cst_28 = arith.constant dense<0.000000e+00> : vector<8x256xf32>
    %73 = tpu.matmul %72, %70, %cst_28 {dimension_numbers = #tpu.dot_dimension_numbers<[1], [0], [0], [1], [0, 0, 1, 1], [], []>} : vector<8x4xf32>, vector<4x256xf32>, vector<8x256xf32> -> vector<8x256xf32>
    %74 = arith.addf %69, %73 : vector<8x256xf32>
    %75 = vector.extract_strided_slice %4 {offsets = [0, 18], sizes = [4, 256], strides = [1, 1]} : vector<4x384xf32> to vector<4x256xf32>
    %76 = vector.broadcast %42 : vector<1x256xf32> to vector<4x256xf32>
    %77 = arith.mulf %75, %76 : vector<4x256xf32>
    %c5 = arith.constant 5 : index
    %c0_29 = arith.constant 0 : index
    %c0_30 = arith.constant 0 : index
    %78 = vector.load %arg2[%c5, %c0_29, %c0_30] : memref<9x8x4xf32, #tpu.memory_space<vmem>>, vector<1x8x4xf32>
    %79 = vector.shape_cast %78 : vector<1x8x4xf32> to vector<8x4xf32>
    %cst_31 = arith.constant dense<0.000000e+00> : vector<8x256xf32>
    %80 = tpu.matmul %79, %77, %cst_31 {dimension_numbers = #tpu.dot_dimension_numbers<[1], [0], [0], [1], [0, 0, 1, 1], [], []>} : vector<8x4xf32>, vector<4x256xf32>, vector<8x256xf32> -> vector<8x256xf32>
    %81 = arith.addf %74, %80 : vector<8x256xf32>
    %82 = vector.extract_strided_slice %4 {offsets = [0, 32], sizes = [4, 256], strides = [1, 1]} : vector<4x384xf32> to vector<4x256xf32>
    %83 = vector.broadcast %33 : vector<1x256xf32> to vector<4x256xf32>
    %84 = arith.mulf %82, %83 : vector<4x256xf32>
    %c6 = arith.constant 6 : index
    %c0_32 = arith.constant 0 : index
    %c0_33 = arith.constant 0 : index
    %85 = vector.load %arg2[%c6, %c0_32, %c0_33] : memref<9x8x4xf32, #tpu.memory_space<vmem>>, vector<1x8x4xf32>
    %86 = vector.shape_cast %85 : vector<1x8x4xf32> to vector<8x4xf32>
    %cst_34 = arith.constant dense<0.000000e+00> : vector<8x256xf32>
    %87 = tpu.matmul %86, %84, %cst_34 {dimension_numbers = #tpu.dot_dimension_numbers<[1], [0], [0], [1], [0, 0, 1, 1], [], []>} : vector<8x4xf32>, vector<4x256xf32>, vector<8x256xf32> -> vector<8x256xf32>
    %88 = arith.addf %81, %87 : vector<8x256xf32>
    %89 = vector.extract_strided_slice %4 {offsets = [0, 33], sizes = [4, 256], strides = [1, 1]} : vector<4x384xf32> to vector<4x256xf32>
    %c7 = arith.constant 7 : index
    %c0_35 = arith.constant 0 : index
    %c0_36 = arith.constant 0 : index
    %90 = vector.load %arg2[%c7, %c0_35, %c0_36] : memref<9x8x4xf32, #tpu.memory_space<vmem>>, vector<1x8x4xf32>
    %91 = vector.shape_cast %90 : vector<1x8x4xf32> to vector<8x4xf32>
    %cst_37 = arith.constant dense<0.000000e+00> : vector<8x256xf32>
    %92 = tpu.matmul %91, %89, %cst_37 {dimension_numbers = #tpu.dot_dimension_numbers<[1], [0], [0], [1], [0, 0, 1, 1], [], []>} : vector<8x4xf32>, vector<4x256xf32>, vector<8x256xf32> -> vector<8x256xf32>
    %93 = arith.addf %88, %92 : vector<8x256xf32>
    %94 = vector.extract_strided_slice %4 {offsets = [0, 34], sizes = [4, 256], strides = [1, 1]} : vector<4x384xf32> to vector<4x256xf32>
    %95 = vector.broadcast %42 : vector<1x256xf32> to vector<4x256xf32>
    %96 = arith.mulf %94, %95 : vector<4x256xf32>
    %c8 = arith.constant 8 : index
    %c0_38 = arith.constant 0 : index
    %c0_39 = arith.constant 0 : index
    %97 = vector.load %arg2[%c8, %c0_38, %c0_39] : memref<9x8x4xf32, #tpu.memory_space<vmem>>, vector<1x8x4xf32>
    %98 = vector.shape_cast %97 : vector<1x8x4xf32> to vector<8x4xf32>
    %cst_40 = arith.constant dense<0.000000e+00> : vector<8x256xf32>
    %99 = tpu.matmul %98, %96, %cst_40 {dimension_numbers = #tpu.dot_dimension_numbers<[1], [0], [0], [1], [0, 0, 1, 1], [], []>} : vector<8x4xf32>, vector<4x256xf32>, vector<8x256xf32> -> vector<8x256xf32>
    %100 = arith.addf %93, %99 : vector<8x256xf32>
    %c0_41 = arith.constant 0 : index
    %c0_42 = arith.constant 0 : index
    %101 = vector.load %arg5[%c0_41, %c0_42] : memref<8x1xf32, #tpu.memory_space<vmem>>, vector<8x1xf32>
    %102 = vector.broadcast %101 : vector<8x1xf32> to vector<8x256xf32>
    %103 = arith.addf %100, %102 : vector<8x256xf32>
    %104 = arith.truncf %103 : vector<8x256xf32> to vector<8x256xbf16>
    %c0_43 = arith.constant 0 : index
    %c0_44 = arith.constant 0 : index
    %c0_45 = arith.constant 0 : index
    %105 = vector.load %arg6[%c0_43, %c0_44, %c0_45] : memref<1x8x256xbf16, #tpu.memory_space<vmem>>, vector<1x8x256xbf16>
    %106 = vector.shape_cast %105 : vector<1x8x256xbf16> to vector<8x256xbf16>
    %107 = vector.shape_cast %104 : vector<8x256xbf16> to vector<1x8x256xbf16>
    tpu.vector_store %arg6[%c0_43, %c0_44, %c0_45], %107 {strides = array<i32>} : memref<1x8x256xbf16, #tpu.memory_space<vmem>>, vector<1x8x256xbf16>,
    return
  }
  func.func @transform_0(%arg0: i32, %arg1: i32) -> (i32, i32, i32) {
    %c0_i32 = arith.constant 0 : i32
    %c0_i32_0 = arith.constant 0 : i32
    %c0_i32_1 = arith.constant 0 : i32
    %c0_i32_2 = arith.constant 0 : i32
    return %c0_i32, %c0_i32_0, %c0_i32_1 : i32, i32, i32
  }
  func.func @transform_1(%arg0: i32, %arg1: i32) -> (i32, i32, i32) {
    %c0_i32 = arith.constant 0 : i32
    %c0_i32_0 = arith.constant 0 : i32
    return %arg0, %c0_i32, %arg1 : i32, i32, i32
  }
  func.func @transform_2(%arg0: i32, %arg1: i32) -> (i32, i32, i32) {
    %c1_i32 = arith.constant 1 : i32
    %0 = arith.addi %arg1, %c1_i32 : i32
    %c2_i32 = arith.constant 2 : i32
    %1 = arith.muli %0, %c2_i32 : i32
    %c0_i32 = arith.constant 0 : i32
    %c0_i32_0 = arith.constant 0 : i32
    return %arg0, %c0_i32, %1 : i32, i32, i32
  }
  func.func @transform_3(%arg0: i32, %arg1: i32) -> (i32, i32) {
    %c0_i32 = arith.constant 0 : i32
    %c0_i32_0 = arith.constant 0 : i32
    %c0_i32_1 = arith.constant 0 : i32
    return %c0_i32, %c0_i32_0 : i32, i32
  }
  func.func @transform_4(%arg0: i32, %arg1: i32) -> (i32, i32, i32) {
    %c0_i32 = arith.constant 0 : i32
    %c0_i32_0 = arith.constant 0 : i32
    return %arg0, %c0_i32, %arg1 : i32, i32, i32
  }
}

</mosaic_0001>

<llo_original>
// kernel: spectral_norm_conv2d.2
$region0: #{spectral_norm_conv2d.2}
  #allocation0 [shape = 'u32[]', space=smem, size = 0x4, offset = 0x4, fixed_abs, tag = 'smem constant byte address 0x4 - core index']
  #allocation1 [shape = 'u32[72,128]{1,0:T(1,128)}', space=vmem, size = 0x9000, scoped, tag = 'internal scratch']
  %s0 = inlined_call_operand.vmem [shape: f32[8,36], index: 0, kind: input, shape index: {}]
  %s1 = inlined_call_operand.vmem [shape: f32[36,8], index: 1, kind: input, shape index: {}]
  %s2 = inlined_call_operand.vmem [shape: f32[9,8,4], index: 2, kind: input, shape index: {}]
  %s3 = inlined_call_operand.vmem [shape: f32[1,8], index: 3, kind: input, shape index: {}]
  %s4 = inlined_call_operand.hbm [shape: f32[1,1], index: 4, kind: output, shape index: {0}]
  %s5 = inlined_call_operand.vmem [shape: f32[9,8,4], index: 5, kind: output, shape index: {1}]
  %6 = xla_tuple %s4, %s5
  %s7 = sld [smem:[#allocation0]]
  $region34: #{spectral_norm_conv2d.2} parent=0
    _
  %s9 = ssub.s32 1, %s7
  %s10 = scalar_select 0, %s9, %s7
  $region1: #{spectral_norm_conv2d.2} parent=0
    #allocation2 [shape = 'u8[512]{0}', space=vmem, size = 0x400, scoped, tag = 'output window, operand 0, single buffered']
    #allocation3 [shape = 's32[1]{0}', space=sflag, size = 0x4, scoped, tag = 'scoped memory for spectral_norm_conv2d.2']
    %11 = vsyncpa [#allocation3], 0
    // Predicated region
    $region2: #{spectral_norm_conv2d.2} parent=1 // pred_check
      _
    $region3: #{spectral_norm_conv2d.2} parent=1 // pred_check_branch
      %13 = sbr.rel (0) target = $region5
    $region4: #{spectral_norm_conv2d.2} parent=1 // pred_region
      _
    $region5: #{spectral_norm_conv2d.2} parent=1 // pred_fallthru
      _
    // Predicated region
    $region6: #{spectral_norm_conv2d.2} parent=1 // pred_check
      _
    $region7: #{spectral_norm_conv2d.2} parent=1 // pred_check_branch
      %15 = sbr.rel (0) target = $region9
    $region8: #{spectral_norm_conv2d.2} parent=1 // pred_region
      _
    $region9: #{spectral_norm_conv2d.2} parent=1 // pred_fallthru
      _
    // Predicated region
    $region10: #{spectral_norm_conv2d.2} parent=1 // pred_check
      _
    $region11: #{spectral_norm_conv2d.2} parent=1 // pred_check_branch
      %17 = sbr.rel (0) target = $region13
    $region12: #{spectral_norm_conv2d.2} parent=1 // pred_region
      _
    $region13: #{spectral_norm_conv2d.2} parent=1 // pred_fallthru
      _
    // Predicated region
    $region14: #{spectral_norm_conv2d.2} parent=1 // pred_check
      _
    $region15: #{spectral_norm_conv2d.2} parent=1 // pred_check_branch
      %19 = sbr.rel (0) target = $region17
    $region16: #{spectral_norm_conv2d.2} parent=1 // pred_region
      _
    $region17: #{spectral_norm_conv2d.2} parent=1 // pred_fallthru
      _
    %v20 = vld [vmem:[%s0] sm:$0xff]
    %v21 = vld [vmem:[%s1] sm:$0xff]
    %v22 = vld [vmem:[%s1 + $0x8] sm:$0xff]
    %v23 = vld [vmem:[%s1 + $0x10] sm:$0xff]
    %v24 = vld [vmem:[%s1 + $0x18] sm:$0xff]
    %v25 = vld [vmem:[%s1 + $0x20] sm:$0xf]
    %v26 = vld [vmem:[%s3] sm:$0x1]
    %vm27 = vcmask 64512
    %v29 = vsel %vm27, %v26, 0
    %31 = vmatpush.msra.mxu0 0.0
    %32 = vmatpush.msra.mxu0 0.0
    %33 = vmatpush.msra.mxu0 0.0
    %34 = vmatpush.msra.mxu0 0.0
    %35 = vmatpush.msra.mxu0 0.0
    %36 = vmatpush.msra.mxu0 0.0
    %37 = vmatpush.msra.mxu0 0.0
    %38 = vmatpush.msra.mxu0 0.0
    %39 = vmatpush.msra.mxu0 0.0
    %40 = vmatpush.msra.mxu0 0.0
    %41 = vmatpush.msra.mxu0 0.0
    %42 = vmatpush.msra.mxu0 0.0
    %43 = vmatpush.msra.mxu0 0.0
    %44 = vmatpush.msra.mxu0 0.0
    %45 = vmatpush.msra.mxu0 0.0
    %v46 = vand.u32 %v20, 4294901760
    %47 = vmatpush.msra.mxu0 %v46
    %v48 = vand.u32 %v29, 4294901760
    %v49 = vsub.f32 %v29, %v48
    %v50 = vand.u32 %v49, 4294901760
    %v51 = vsub.f32 %v49, %v50
    %v52 = vand.u32 %v51, 4294901760
    %53 = vmatmul.f32.gmra.mxu0 %v52
    %v54 = vpop.f32.mrf.mxu0
    %v55 = vadd.f32 0.0, %v54
    %56 = vdwg.mxu0
    %57 = vmatpush.msra.mxu0 0.0
    %58 = vmatpush.msra.mxu0 0.0
    %59 = vmatpush.msra.mxu0 0.0
    %60 = vmatpush.msra.mxu0 0.0
    %61 = vmatpush.msra.mxu0 0.0
    %62 = vmatpush.msra.mxu0 0.0
    %63 = vmatpush.msra.mxu0 0.0
    %64 = vmatpush.msra.mxu0 0.0
    %65 = vmatpush.msra.mxu0 0.0
    %66 = vmatpush.msra.mxu0 0.0
    %67 = vmatpush.msra.mxu0 0.0
    %68 = vmatpush.msra.mxu0 0.0
    %69 = vmatpush.msra.mxu0 0.0
    %70 = vmatpush.msra.mxu0 0.0
    %71 = vmatpush.msra.mxu0 0.0
    %v72 = vand.u32 %v20, 4294901760
    %v73 = vsub.f32 %v20, %v72
    %v74 = vand.u32 %v73, 4294901760
    %v75 = vsub.f32 %v73, %v74
    %v76 = vand.u32 %v75, 4294901760
    %77 = vmatpush.msra.mxu0 %v76
    %v78 = vand.u32 %v29, 4294901760
    %79 = vmatmul.f32.gmra.mxu0 %v78
    %v80 = vpop.f32.mrf.mxu0
    %v81 = vadd.f32 %v55, %v80
    %82 = vdwg.mxu0
    %83 = vmatpush.msra.mxu0 0.0
    %84 = vmatpush.msra.mxu0 0.0
    %85 = vmatpush.msra.mxu0 0.0
    %86 = vmatpush.msra.mxu0 0.0
    %87 = vmatpush.msra.mxu0 0.0
    %88 = vmatpush.msra.mxu0 0.0
    %89 = vmatpush.msra.mxu0 0.0
    %90 = vmatpush.msra.mxu0 0.0
    %91 = vmatpush.msra.mxu0 0.0
    %92 = vmatpush.msra.mxu0 0.0
    %93 = vmatpush.msra.mxu0 0.0
    %94 = vmatpush.msra.mxu0 0.0
    %95 = vmatpush.msra.mxu0 0.0
    %96 = vmatpush.msra.mxu0 0.0
    %97 = vmatpush.msra.mxu0 0.0
    %v98 = vand.u32 %v20, 4294901760
    %v99 = vsub.f32 %v20, %v98
    %100 = vmatpush.msra.mxu0 %v99
    %v101 = vand.u32 %v29, 4294901760
    %v102 = vsub.f32 %v29, %v101
    %103 = vmatmul.f32.gmra.mxu0 %v102
    %v104 = vpop.f32.mrf.mxu0
    %v105 = vadd.f32 %v81, %v104
    %106 = vdwg.mxu0
    %107 = vmatpush.msra.mxu0 0.0
    %108 = vmatpush.msra.mxu0 0.0
    %109 = vmatpush.msra.mxu0 0.0
    %110 = vmatpush.msra.mxu0 0.0
    %111 = vmatpush.msra.mxu0 0.0
    %112 = vmatpush.msra.mxu0 0.0
    %113 = vmatpush.msra.mxu0 0.0
    %114 = vmatpush.msra.mxu0 0.0
    %115 = vmatpush.msra.mxu0 0.0
    %116 = vmatpush.msra.mxu0 0.0
    %117 = vmatpush.msra.mxu0 0.0
    %118 = vmatpush.msra.mxu0 0.0
    %119 = vmatpush.msra.mxu0 0.0
    %120 = vmatpush.msra.mxu0 0.0
    %121 = vmatpush.msra.mxu0 0.0
    %v122 = vand.u32 %v20, 4294901760
    %123 = vmatpush.msra.mxu0 %v122
    %v124 = vand.u32 %v29, 4294901760
    %v125 = vsub.f32 %v29, %v124
    %v126 = vand.u32 %v125, 4294901760
    %127 = vmatmul.f32.gmra.mxu0 %v126
    %v128 = vpop.f32.mrf.mxu0
    %v129 = vadd.f32 %v105, %v128
    %130 = vdwg.mxu0
    %131 = vmatpush.msra.mxu0 0.0
    %132 = vmatpush.msra.mxu0 0.0
    %133 = vmatpush.msra.mxu0 0.0
    %134 = vmatpush.msra.mxu0 0.0
    %135 = vmatpush.msra.mxu0 0.0
    %136 = vmatpush.msra.mxu0 0.0
    %137 = vmatpush.msra.mxu0 0.0
    %138 = vmatpush.msra.mxu0 0.0
    %139 = vmatpush.msra.mxu0 0.0
    %140 = vmatpush.msra.mxu0 0.0
    %141 = vmatpush.msra.mxu0 0.0
    %142 = vmatpush.msra.mxu0 0.0
    %143 = vmatpush.msra.mxu0 0.0
    %144 = vmatpush.msra.mxu0 0.0
    %145 = vmatpush.msra.mxu0 0.0
    %v146 = vand.u32 %v20, 4294901760
    %v147 = vsub.f32 %v20, %v146
    %v148 = vand.u32 %v147, 4294901760
    %149 = vmatpush.msra.mxu0 %v148
    %v150 = vand.u32 %v29, 4294901760
    %151 = vmatmul.f32.gmra.mxu0 %v150
    %v152 = vpop.f32.mrf.mxu0
    %v153 = vadd.f32 %v129, %v152
    %154 = vdwg.mxu0
    %155 = vmatpush.msra.mxu0 0.0
    %156 = vmatpush.msra.mxu0 0.0
    %157 = vmatpush.msra.mxu0 0.0
    %158 = vmatpush.msra.mxu0 0.0
    %159 = vmatpush.msra.mxu0 0.0
    %160 = vmatpush.msra.mxu0 0.0
    %161 = vmatpush.msra.mxu0 0.0
    %162 = vmatpush.msra.mxu0 0.0
    %163 = vmatpush.msra.mxu0 0.0
    %164 = vmatpush.msra.mxu0 0.0
    %165 = vmatpush.msra.mxu0 0.0
    %166 = vmatpush.msra.mxu0 0.0
    %167 = vmatpush.msra.mxu0 0.0
    %168 = vmatpush.msra.mxu0 0.0
    %169 = vmatpush.msra.mxu0 0.0
    %v170 = vand.u32 %v20, 4294901760
    %171 = vmatpush.msra.mxu0 %v170
    %v172 = vand.u32 %v29, 4294901760
    %173 = vmatmul.f32.gmra.mxu0 %v172
    %v174 = vpop.f32.mrf.mxu0
    %v175 = vadd.f32 %v153, %v174
    %176 = vdwg.mxu0
    %v177 = vmul.f32 %v175, %v175
    %vm178 = vcmask 286720
    %v179 = vsel %vm178, %v177, 0.0
    %180 = vadd.xlane.f32.xlu0 %v179
    %v181 = vpop.xlane.xlu0 %180
    %v182 = vrot.slane %v181, 4
    %v183 = vadd.f32 %v181, %v182
    %v184 = vrot.slane %v183, 2
    %v185 = vadd.f32 %v183, %v184
    %v186 = vrot.slane %v185, 1
    %v187 = vadd.f32 %v185, %v186
    %s188 = vtos %v187
    %v189 = vstv %s188
    %v190 = vrsqrt.pop %v189
    %v191 = vmul.f32 %v190, %v189
    %v192 = vmul.f32 %v191, %v190
    %v193 = vmul.f32 0.5, %v192
    %v194 = vsub.f32 1.5, %v193
    %v195 = vmul.f32 %v190, %v194
    %v196 = vmul.f32 %v189, %v195
    %vm197 = vcmp.eq.f32.partialorder %v189, inf
    %v198 = vsel %vm197, %v189, %v196
    %vm199 = vcmp.eq.f32.partialorder %v189, 0.0
    %v200 = vand.u32 %v189, 2147483648
    %v201 = vsel %vm199, %v200, %v198
    %v202 = vadd.f32 %v201, 0.0001
    %v203 = vrcp.pop %v202
    %v204 = vmul.f32 %v202, %v203
    %v205 = vsub.f32 1.0, %v204
    %v206 = vmul.f32 %v203, %v205
    %v207 = vadd.f32 %v203, %v206
    %vm208 = vweird.f32 %v202
    %vm209 = vweird.f32 %v203
    %vm210 = vmor %vm208, %vm209
    %v211 = vsel %vm210, %v203, %v207
    %v212 = vand.u32 2147483647, %v202
    %vm213 = vcmp.eq.f32.partialorder %v212, 8.507059e+37
    %v214 = vand.u32 %v202, 2147483648
    %v215 = vor.u32 1.1754944e-38, %v214
    %v216 = vsel %vm213, %v215, %v211
    %v217 = vmul.f32 %v175, %v216
    %vm218 = vcmask 293888
    %v220 = vsel %vm218, %v217, 0
    %vm222 = vcmask 1043456
    %v224 = vsel %vm222, %v25, 0
    %226 = vmatpush.msra.mxu0 0.0
    %227 = vmatpush.msra.mxu0 0.0
    %228 = vmatpush.msra.mxu0 0.0
    %229 = vmatpush.msra.mxu0 0.0
    %230 = vmatpush.msra.mxu0 0.0
    %231 = vmatpush.msra.mxu0 0.0
    %232 = vmatpush.msra.mxu0 0.0
    %233 = vmatpush.msra.mxu0 0.0
    %234 = vmatpush.msra.mxu0 0.0
    %235 = vmatpush.msra.mxu0 0.0
    %236 = vmatpush.msra.mxu0 0.0
    %v237 = vand.u32 %v224, 4294901760
    %238 = vmatpush.msra.mxu0 %v237
    %v239 = vand.u32 %v24, 4294901760
    %240 = vmatpush.msra.mxu0 %v239
    %v241 = vand.u32 %v23, 4294901760
    %242 = vmatpush.msra.mxu0 %v241
    %v243 = vand.u32 %v22, 4294901760
    %244 = vmatpush.msra.mxu0 %v243
    %v245 = vand.u32 %v21, 4294901760
    %246 = vmatpush.msra.mxu0 %v245
    %v247 = vand.u32 %v220, 4294901760
    %v248 = vsub.f32 %v220, %v247
    %v249 = vand.u32 %v248, 4294901760
    %v250 = vsub.f32 %v248, %v249
    %v251 = vand.u32 %v250, 4294901760
    %252 = vmatmul.f32.gmra.mxu0 %v251
    %v253 = vpop.f32.mrf.mxu0
    %v254 = vadd.f32 0.0, %v253
    %255 = vdwg.mxu0
    %256 = vmatpush.msra.mxu0 0.0
    %257 = vmatpush.msra.mxu0 0.0
    %258 = vmatpush.msra.mxu0 0.0
    %259 = vmatpush.msra.mxu0 0.0
    %260 = vmatpush.msra.mxu0 0.0
    %261 = vmatpush.msra.mxu0 0.0
    %262 = vmatpush.msra.mxu0 0.0
    %263 = vmatpush.msra.mxu0 0.0
    %264 = vmatpush.msra.mxu0 0.0
    %265 = vmatpush.msra.mxu0 0.0
    %266 = vmatpush.msra.mxu0 0.0
    %v267 = vand.u32 %v224, 4294901760
    %v268 = vsub.f32 %v224, %v267
    %v269 = vand.u32 %v268, 4294901760
    %v270 = vsub.f32 %v268, %v269
    %v271 = vand.u32 %v270, 4294901760
    %272 = vmatpush.msra.mxu0 %v271
    %v273 = vand.u32 %v24, 4294901760
    %v274 = vsub.f32 %v24, %v273
    %v275 = vand.u32 %v274, 4294901760
    %v276 = vsub.f32 %v274, %v275
    %v277 = vand.u32 %v276, 4294901760
    %278 = vmatpush.msra.mxu0 %v277
    %v279 = vand.u32 %v23, 4294901760
    %v280 = vsub.f32 %v23, %v279
    %v281 = vand.u32 %v280, 4294901760
    %v282 = vsub.f32 %v280, %v281
    %v283 = vand.u32 %v282, 4294901760
    %284 = vmatpush.msra.mxu0 %v283
    %v285 = vand.u32 %v22, 4294901760
    %v286 = vsub.f32 %v22, %v285
    %v287 = vand.u32 %v286, 4294901760
    %v288 = vsub.f32 %v286, %v287
    %v289 = vand.u32 %v288, 4294901760
    %290 = vmatpush.msra.mxu0 %v289
    %v291 = vand.u32 %v21, 4294901760
    %v292 = vsub.f32 %v21, %v291
    %v293 = vand.u32 %v292, 4294901760
    %v294 = vsub.f32 %v292, %v293
    %v295 = vand.u32 %v294, 4294901760
    %296 = vmatpush.msra.mxu0 %v295
    %v297 = vand.u32 %v220, 4294901760
    %298 = vmatmul.f32.gmra.mxu0 %v297
    %v299 = vpop.f32.mrf.mxu0
    %v300 = vadd.f32 %v254, %v299
    %301 = vdwg.mxu0
    %302 = vmatpush.msra.mxu0 0.0
    %303 = vmatpush.msra.mxu0 0.0
    %304 = vmatpush.msra.mxu0 0.0
    %305 = vmatpush.msra.mxu0 0.0
    %306 = vmatpush.msra.mxu0 0.0
    %307 = vmatpush.msra.mxu0 0.0
    %308 = vmatpush.msra.mxu0 0.0
    %309 = vmatpush.msra.mxu0 0.0
    %310 = vmatpush.msra.mxu0 0.0
    %311 = vmatpush.msra.mxu0 0.0
    %312 = vmatpush.msra.mxu0 0.0
    %v313 = vand.u32 %v224, 4294901760
    %v314 = vsub.f32 %v224, %v313
    %315 = vmatpush.msra.mxu0 %v314
    %v316 = vand.u32 %v24, 4294901760
    %v317 = vsub.f32 %v24, %v316
    %318 = vmatpush.msra.mxu0 %v317
    %v319 = vand.u32 %v23, 4294901760
    %v320 = vsub.f32 %v23, %v319
    %321 = vmatpush.msra.mxu0 %v320
    %v322 = vand.u32 %v22, 4294901760
    %v323 = vsub.f32 %v22, %v322
    %324 = vmatpush.msra.mxu0 %v323
    %v325 = vand.u32 %v21, 4294901760
    %v326 = vsub.f32 %v21, %v325
    %327 = vmatpush.msra.mxu0 %v326
    %v328 = vand.u32 %v220, 4294901760
    %v329 = vsub.f32 %v220, %v328
    %330 = vmatmul.f32.gmra.mxu0 %v329
    %v331 = vpop.f32.mrf.mxu0
    %v332 = vadd.f32 %v300, %v331
    %333 = vdwg.mxu0
    %334 = vmatpush.msra.mxu0 0.0
    %335 = vmatpush.msra.mxu0 0.0
    %336 = vmatpush.msra.mxu0 0.0
    %337 = vmatpush.msra.mxu0 0.0
    %338 = vmatpush.msra.mxu0 0.0
    %339 = vmatpush.msra.mxu0 0.0
    %340 = vmatpush.msra.mxu0 0.0
    %341 = vmatpush.msra.mxu0 0.0
    %342 = vmatpush.msra.mxu0 0.0
    %343 = vmatpush.msra.mxu0 0.0
    %344 = vmatpush.msra.mxu0 0.0
    %v345 = vand.u32 %v224, 4294901760
    %346 = vmatpush.msra.mxu0 %v345
    %v347 = vand.u32 %v24, 4294901760
    %348 = vmatpush.msra.mxu0 %v347
    %v349 = vand.u32 %v23, 4294901760
    %350 = vmatpush.msra.mxu0 %v349
    %v351 = vand.u32 %v22, 4294901760
    %352 = vmatpush.msra.mxu0 %v351
    %v353 = vand.u32 %v21, 4294901760
    %354 = vmatpush.msra.mxu0 %v353
    %v355 = vand.u32 %v220, 4294901760
    %v356 = vsub.f32 %v220, %v355
    %v357 = vand.u32 %v356, 4294901760
    %358 = vmatmul.f32.gmra.mxu0 %v357
    %v359 = vpop.f32.mrf.mxu0
    %v360 = vadd.f32 %v332, %v359
    %361 = vdwg.mxu0
    %362 = vmatpush.msra.mxu0 0.0
    %363 = vmatpush.msra.mxu0 0.0
    %364 = vmatpush.msra.mxu0 0.0
    %365 = vmatpush.msra.mxu0 0.0
    %366 = vmatpush.msra.mxu0 0.0
    %367 = vmatpush.msra.mxu0 0.0
    %368 = vmatpush.msra.mxu0 0.0
    %369 = vmatpush.msra.mxu0 0.0
    %370 = vmatpush.msra.mxu0 0.0
    %371 = vmatpush.msra.mxu0 0.0
    %372 = vmatpush.msra.mxu0 0.0
    %v373 = vand.u32 %v224, 4294901760
    %v374 = vsub.f32 %v224, %v373
    %v375 = vand.u32 %v374, 4294901760
    %376 = vmatpush.msra.mxu0 %v375
    %v377 = vand.u32 %v24, 4294901760
    %v378 = vsub.f32 %v24, %v377
    %v379 = vand.u32 %v378, 4294901760
    %380 = vmatpush.msra.mxu0 %v379
    %v381 = vand.u32 %v23, 4294901760
    %v382 = vsub.f32 %v23, %v381
    %v383 = vand.u32 %v382, 4294901760
    %384 = vmatpush.msra.mxu0 %v383
    %v385 = vand.u32 %v22, 4294901760
    %v386 = vsub.f32 %v22, %v385
    %v387 = vand.u32 %v386, 4294901760
    %388 = vmatpush.msra.mxu0 %v387
    %v389 = vand.u32 %v21, 4294901760
    %v390 = vsub.f32 %v21, %v389
    %v391 = vand.u32 %v390, 4294901760
    %392 = vmatpush.msra.mxu0 %v391
    %v393 = vand.u32 %v220, 4294901760
    %394 = vmatmul.f32.gmra.mxu0 %v393
    %v395 = vpop.f32.mrf.mxu0
    %v396 = vadd.f32 %v360, %v395
    %397 = vdwg.mxu0
    %398 = vmatpush.msra.mxu0 0.0
    %399 = vmatpush.msra.mxu0 0.0
    %400 = vmatpush.msra.mxu0 0.0
    %401 = vmatpush.msra.mxu0 0.0
    %402 = vmatpush.msra.mxu0 0.0
    %403 = vmatpush.msra.mxu0 0.0
    %404 = vmatpush.msra.mxu0 0.0
    %405 = vmatpush.msra.mxu0 0.0
    %406 = vmatpush.msra.mxu0 0.0
    %407 = vmatpush.msra.mxu0 0.0
    %408 = vmatpush.msra.mxu0 0.0
    %v409 = vand.u32 %v224, 4294901760
    %410 = vmatpush.msra.mxu0 %v409
    %v411 = vand.u32 %v24, 4294901760
    %412 = vmatpush.msra.mxu0 %v411
    %v413 = vand.u32 %v23, 4294901760
    %414 = vmatpush.msra.mxu0 %v413
    %v415 = vand.u32 %v22, 4294901760
    %416 = vmatpush.msra.mxu0 %v415
    %v417 = vand.u32 %v21, 4294901760
    %418 = vmatpush.msra.mxu0 %v417
    %v419 = vand.u32 %v220, 4294901760
    %420 = vmatmul.f32.gmra.mxu0 %v419
    %v421 = vpop.f32.mrf.mxu0
    %v422 = vadd.f32 %v396, %v421
    %423 = vdwg.mxu0
    %v424 = vmul.f32 %v422, %v422
    %vm425 = vcmask 57344
    %v426 = vsel %vm425, %v424, 0.0
    %427 = vadd.xlane.f32.xlu0 %v426
    %v428 = vpop.xlane.xlu0 %427
    %v429 = vrot.slane %v428, 4
    %v430 = vadd.f32 %v428, %v429
    %v431 = vrot.slane %v430, 2
    %v432 = vadd.f32 %v430, %v431
    %v433 = vrot.slane %v432, 1
    %v434 = vadd.f32 %v432, %v433
    %s435 = vtos %v434
    %v436 = vstv %s435
    %v437 = vrsqrt.pop %v436
    %v438 = vmul.f32 %v437, %v436
    %v439 = vmul.f32 %v438, %v437
    %v440 = vmul.f32 0.5, %v439
    %v441 = vsub.f32 1.5, %v440
    %v442 = vmul.f32 %v437, %v441
    %v443 = vmul.f32 %v436, %v442
    %vm444 = vcmp.eq.f32.partialorder %v436, inf
    %v445 = vsel %vm444, %v436, %v443
    %vm446 = vcmp.eq.f32.partialorder %v436, 0.0
    %v447 = vand.u32 %v436, 2147483648
    %v448 = vsel %vm446, %v447, %v445
    %v449 = vadd.f32 %v448, 0.0001
    %v450 = vrcp.pop %v449
    %v451 = vmul.f32 %v449, %v450
    %v452 = vsub.f32 1.0, %v451
    %v453 = vmul.f32 %v450, %v452
    %v454 = vadd.f32 %v450, %v453
    %vm455 = vweird.f32 %v449
    %vm456 = vweird.f32 %v450
    %vm457 = vmor %vm455, %vm456
    %v458 = vsel %vm457, %v450, %v454
    %v459 = vand.u32 2147483647, %v449
    %vm460 = vcmp.eq.f32.partialorder %v459, 8.507059e+37
    %v461 = vand.u32 %v449, 2147483648
    %v462 = vor.u32 1.1754944e-38, %v461
    %v463 = vsel %vm460, %v462, %v458
    %v464 = vmul.f32 %v422, %v463
    %v465 = vmul.f32 %v464, %v422
    %v466 = vsel %vm425, %v465, 0.0
    %467 = vadd.xlane.f32.xlu0 %v466
    %v468 = vpop.xlane.xlu0 %467
    %v469 = vrot.slane %v468, 4
    %v470 = vadd.f32 %v468, %v469
    %v471 = vrot.slane %v470, 2
    %v472 = vadd.f32 %v470, %v471
    %v473 = vrot.slane %v472, 1
    %v474 = vadd.f32 %v472, %v473
    %s475 = vtos %v474
    %v476 = vstv %s475
    %vm477 = vcmask 0
    %478 = vst.msk [vmem:[#allocation2] sm:$0x1] %vm477, %v476
    %v479 = vld [vmem:[%s2] sm:$0xff]
    %v480 = vld [vmem:[%s2 + $0x8] sm:$0xff]
    %v481 = vld [vmem:[%s2 + $0x10] sm:$0xff]
    %v482 = vld [vmem:[%s2 + $0x18] sm:$0xff]
    %v483 = vld [vmem:[%s2 + $0x20] sm:$0xff]
    %v484 = vld [vmem:[%s2 + $0x28] sm:$0xff]
    %v485 = vld [vmem:[%s2 + $0x30] sm:$0xff]
    %v486 = vld [vmem:[%s2 + $0x38] sm:$0xff]
    %v487 = vld [vmem:[%s2 + $0x40] sm:$0xff]
    %v488 = vstv %s475
    %v489 = vrcp.pop %v488
    %v490 = vmul.f32 %v488, %v489
    %v491 = vsub.f32 1.0, %v490
    %v492 = vmul.f32 %v489, %v491
    %v493 = vadd.f32 %v489, %v492
    %vm494 = vweird.f32 %v488
    %vm495 = vweird.f32 %v489
    %vm496 = vmor %vm494, %vm495
    %v497 = vsel %vm496, %v489, %v493
    %v498 = vand.u32 2147483647, %v488
    %vm499 = vcmp.eq.f32.partialorder %v498, 8.507059e+37
    %v500 = vand.u32 %v488, 2147483648
    %v501 = vor.u32 1.1754944e-38, %v500
    %v502 = vsel %vm499, %v501, %v497
    %s503 = vtos %v502
    %v504 = vstv %s503
    %v505 = vmul.f32 %v479, %v504
    %v506 = vmul.f32 %v480, %v504
    %v507 = vmul.f32 %v481, %v504
    %v508 = vmul.f32 %v482, %v504
    %v509 = vmul.f32 %v483, %v504
    %v510 = vmul.f32 %v484, %v504
    %v511 = vmul.f32 %v485, %v504
    %v512 = vmul.f32 %v486, %v504
    %v513 = vmul.f32 %v487, %v504
    %vm514 = vcmask 31744
    %515 = vst.msk [vmem:[%s5] sm:$0xff] %vm514, %v505
    %516 = vst.msk [vmem:[%s5 + $0x8] sm:$0xff] %vm514, %v506
    %517 = vst.msk [vmem:[%s5 + $0x10] sm:$0xff] %vm514, %v507
    %518 = vst.msk [vmem:[%s5 + $0x18] sm:$0xff] %vm514, %v508
    %519 = vst.msk [vmem:[%s5 + $0x20] sm:$0xff] %vm514, %v509
    %520 = vst.msk [vmem:[%s5 + $0x28] sm:$0xff] %vm514, %v510
    %521 = vst.msk [vmem:[%s5 + $0x30] sm:$0xff] %vm514, %v511
    %522 = vst.msk [vmem:[%s5 + $0x38] sm:$0xff] %vm514, %v512
    %523 = vst.msk [vmem:[%s5 + $0x40] sm:$0xff] %vm514, %v513
    // Predicated region
    $region18: #{spectral_norm_conv2d.2} parent=1 // pred_check
      _
    $region19: #{spectral_norm_conv2d.2} parent=1 // pred_check_branch
      %525 = sbr.rel (0) target = $region21
    $region20: #{spectral_norm_conv2d.2} parent=1 // pred_region
      %527 = vsyncadd [#allocation3], 0
      %s529 = sshll.u32 [#allocation2], 4
      %s530 = int_to_ptr.vmem [resolvable:$true] %s529
      %s531 = sshll.u32 %s4, 4
      %s532 = int_to_ptr.hbm [resolvable:$true] %s531
      %534 = dma.vmem_to_hbm [thread:$0]  %s530, 16, %s532, [#allocation3]
    $region21: #{spectral_norm_conv2d.2} parent=1 // pred_fallthru
      _
    // Predicated region
    $region22: #{spectral_norm_conv2d.2} parent=1 // pred_check
      _
    $region23: #{spectral_norm_conv2d.2} parent=1 // pred_check_branch
      %536 = sbr.rel (0) target = $region25
    $region24: #{spectral_norm_conv2d.2} parent=1 // pred_region
      _
    $region25: #{spectral_norm_conv2d.2} parent=1 // pred_fallthru
      _
    // Predicated region
    $region26: #{spectral_norm_conv2d.2} parent=1 // pred_check
      _
    $region27: #{spectral_norm_conv2d.2} parent=1 // pred_check_branch
      %538 = sbr.rel (0) target = $region29
    $region28: #{spectral_norm_conv2d.2} parent=1 // pred_region
      %540 = dma.done [#allocation3], 16
    $region29: #{spectral_norm_conv2d.2} parent=1 // pred_fallthru
      _
    // Predicated region
    $region30: #{spectral_norm_conv2d.2} parent=1 // pred_check
      _
    $region31: #{spectral_norm_conv2d.2} parent=1 // pred_check_branch
      %542 = sbr.rel (0) target = $region33
    $region32: #{spectral_norm_conv2d.2} parent=1 // pred_region
      _
    $region33: #{spectral_norm_conv2d.2} parent=1 // pred_fallthru
      _
    %543 = vsyncpa [#allocation3], 1

// kernel: spectral_norm_conv2d.3
$region0: #{spectral_norm_conv2d.3}
  #allocation0 [shape = 'u32[]', space=smem, size = 0x4, offset = 0x4, fixed_abs, tag = 'smem constant byte address 0x4 - core index']
  #allocation1 [shape = 'u32[72,128]{1,0:T(1,128)}', space=vmem, size = 0x9000, scoped, tag = 'internal scratch']
  %s0 = inlined_call_operand.vmem [shape: f32[9,8,4], index: 0, kind: input, shape index: {}]
  %s1 = inlined_call_operand.vmem [shape: f32[2,4,384], index: 1, kind: input, shape index: {}, may-alias: {1,2}]
  %s2 = inlined_call_operand.vmem [shape: f32[2,4,384], index: 2, kind: input, shape index: {}, may-alias: {1,2}]
  %s3 = inlined_call_operand.vmem [shape: f32[8,1], index: 3, kind: input, shape index: {}]
  %s4 = inlined_call_operand.vmem [shape: bf16[2,8,256], index: 4, kind: output, shape index: {}]
  %s5 = sld [smem:[#allocation0]]
  $region49: #{spectral_norm_conv2d.3} parent=0
    _
  %s7 = ssub.s32 1, %s5
  %s8 = scalar_select 0, %s7, %s5
  loop: start=0, step=1, limit=4
  $region2: #{spectral_norm_conv2d.3} parent=0 // loop_pre_header
    _
  $region3: #{spectral_norm_conv2d.3} parent=0 // loop_header
    %s10 = sphi 0, %s14
    %p11 = scmp.ge.s32.totalorder %s10, 4
    %s17 = sphi 0, %s29
    %s18 = sphi 0, %s25
    %s19 = sphi 0, %s17
    %s20 = sphi 0, %s18
    %s21 = sphi 0, %s19
    %s22 = sphi 0, %s20
    %s30 = sphi 0, %s30
    %s32 = sphi 0, %s30
    %s33 = sphi 0, %s32
    %s47 = sphi 0, %s33
    %s55 = sphi 0, %s57
    %s58 = sphi 0, %s55
    %s59 = sphi 0, %s58
    %s75 = sphi 0, %s59
    %s87 = sphi 0, %s89
    %s90 = sphi 0, %s87
    %s91 = sphi 0, %s90
    %s107 = sphi 0, %s91
    %s111 = sphi 0, %s111
    %s113 = sphi 0, %s111
    %s114 = sphi 0, %s113
    %s128 = sphi 0, %s114
    %s136 = sphi 0, %s138
    %s139 = sphi 0, %s136
    %s140 = sphi 0, %s139
    %s156 = sphi 0, %s140
  $region4: #{spectral_norm_conv2d.3} parent=0 // loop_header_branch
    %13 = sbr.rel (%p11) target = $region8
  $region5: #{spectral_norm_conv2d.3} parent=0 // loop_body
    %s15 = ssub.s32 %s10, 1
    %s16 = ssub.s32 %s10, 2
    %s23 = sadd.s32 1, %s18
    %p24 = scmp.ge.s32.totalorder %s23, 1
    %s25 = scalar_select %p24, 0, %s23
    %s26 = sadd.s32 1, %s17
    %s27 = scalar_select %p24, %s26, %s17
    %p28 = scmp.ge.s32.totalorder %s27, 2
    %s29 = scalar_select %p28, 0, %s27
    %s31 = sadd.s32 %s30, 1
    %p34 = scmp.eq.s32.totalorder %s10, 1
    %p35 = scmp.ne.s32.totalorder %s30, %s32
    %p36 = scmp.eq.s32.totalorder %s10, 0
    %p37 = por %p35, %p36
    %p38 = scmp.ne.s32.totalorder %s30, %s32
    %p39 = scmp.eq.s32.totalorder %s15, 1
    %p40 = por %p38, %p39
    %p41 = scmp.ne.s32.totalorder %s32, %s33
    %p42 = scmp.eq.s32.totalorder %s15, 0
    %p43 = por %p41, %p42
    %p44 = scmp.ne.s32.totalorder %s32, %s33
    %p45 = scmp.eq.s32.totalorder %s16, 1
    %p46 = por %p44, %p45
    %p48 = scmp.ne.s32.totalorder %s33, %s47
    %p49 = scmp.eq.s32.totalorder %s16, 0
    %p50 = por %p48, %p49
    %s51 = ssub.s32 %s17, %s29
    %s52 = ssub.s32 %s18, %s25
    %s53 = sor.u32 %s51, %s52
    %p54 = scmp.eq.s32.totalorder %s53, 0
    %s56 = sadd.s32 %s55, 1
    %s57 = scalar_select %p54, %s55, %s56
    %p60 = pneg %p54
    %p61 = scmp.eq.s32.totalorder %s10, 1
    %p62 = por %p60, %p61
    %p63 = scmp.ne.s32.totalorder %s55, %s58
    %p64 = scmp.eq.s32.totalorder %s10, 0
    %p65 = por %p63, %p64
    %p66 = scmp.ne.s32.totalorder %s55, %s58
    %p67 = scmp.eq.s32.totalorder %s15, 1
    %p68 = por %p66, %p67
    %p69 = scmp.ne.s32.totalorder %s58, %s59
    %p70 = scmp.eq.s32.totalorder %s15, 0
    %p71 = por %p69, %p70
    %p72 = scmp.ne.s32.totalorder %s58, %s59
    %p73 = scmp.eq.s32.totalorder %s16, 1
    %p74 = por %p72, %p73
    %p76 = scmp.ne.s32.totalorder %s59, %s75
    %p77 = scmp.eq.s32.totalorder %s16, 0
    %p78 = por %p76, %p77
    %s79 = sadd.s32 %s18, 1
    %s80 = smul.u32 %s79, 2
    %s81 = sadd.s32 %s25, 1
    %s82 = smul.u32 %s81, 2
    %s83 = ssub.s32 %s17, %s29
    %s84 = ssub.s32 %s80, %s82
    %s85 = sor.u32 %s83, %s84
    %p86 = scmp.eq.s32.totalorder %s85, 0
    %s88 = sadd.s32 %s87, 1
    %s89 = scalar_select %p86, %s87, %s88
    %p92 = pneg %p86
    %p93 = scmp.eq.s32.totalorder %s10, 1
    %p94 = por %p92, %p93
    %p95 = scmp.ne.s32.totalorder %s87, %s90
    %p96 = scmp.eq.s32.totalorder %s10, 0
    %p97 = por %p95, %p96
    %p98 = scmp.ne.s32.totalorder %s87, %s90
    %p99 = scmp.eq.s32.totalorder %s15, 1
    %p100 = por %p98, %p99
    %p101 = scmp.ne.s32.totalorder %s90, %s91
    %p102 = scmp.eq.s32.totalorder %s15, 0
    %p103 = por %p101, %p102
    %p104 = scmp.ne.s32.totalorder %s90, %s91
    %p105 = scmp.eq.s32.totalorder %s16, 1
    %p106 = por %p104, %p105
    %p108 = scmp.ne.s32.totalorder %s91, %s107
    %p109 = scmp.eq.s32.totalorder %s16, 0
    %p110 = por %p108, %p109
    %s112 = sadd.s32 %s111, 1
    %p115 = scmp.eq.s32.totalorder %s10, 1
    %p116 = scmp.ne.s32.totalorder %s111, %s113
    %p117 = scmp.eq.s32.totalorder %s10, 0
    %p118 = por %p116, %p117
    %p119 = scmp.ne.s32.totalorder %s111, %s113
    %p120 = scmp.eq.s32.totalorder %s15, 1
    %p121 = por %p119, %p120
    %p122 = scmp.ne.s32.totalorder %s113, %s114
    %p123 = scmp.eq.s32.totalorder %s15, 0
    %p124 = por %p122, %p123
    %p125 = scmp.ne.s32.totalorder %s113, %s114
    %p126 = scmp.eq.s32.totalorder %s16, 1
    %p127 = por %p125, %p126
    %p129 = scmp.ne.s32.totalorder %s114, %s128
    %p130 = scmp.eq.s32.totalorder %s16, 0
    %p131 = por %p129, %p130
    %s132 = ssub.s32 %s17, %s29
    %s133 = ssub.s32 %s18, %s25
    %s134 = sor.u32 %s132, %s133
    %p135 = scmp.eq.s32.totalorder %s134, 0
    %s137 = sadd.s32 %s136, 1
    %s138 = scalar_select %p135, %s136, %s137
    %p141 = pneg %p135
    %p142 = scmp.eq.s32.totalorder %s10, 1
    %p143 = por %p141, %p142
    %p144 = scmp.ne.s32.totalorder %s136, %s139
    %p145 = scmp.eq.s32.totalorder %s10, 0
    %p146 = por %p144, %p145
    %p147 = scmp.ne.s32.totalorder %s136, %s139
    %p148 = scmp.eq.s32.totalorder %s15, 1
    %p149 = por %p147, %p148
    %p150 = scmp.ne.s32.totalorder %s139, %s140
    %p151 = scmp.eq.s32.totalorder %s15, 0
    %p152 = por %p150, %p151
    %p153 = scmp.ne.s32.totalorder %s139, %s140
    %p154 = scmp.eq.s32.totalorder %s16, 1
    %p155 = por %p153, %p154
    %p157 = scmp.ne.s32.totalorder %s140, %s156
    %p158 = scmp.eq.s32.totalorder %s16, 0
    %p159 = por %p157, %p158
    %p160 = scmp.le.s32.totalorder 1, %s10
    %p161 = scmp.lt.s32.totalorder %s10, 3
    %p162 = pnand %p160, %p161
    %p163 = pneg %p162
    // Predicated region
    $region9: #{spectral_norm_conv2d.3} parent=5 // pred_check
      _
    $region10: #{spectral_norm_conv2d.3} parent=5 // pred_check_branch
      %165 = sbr.rel (%p162) target = $region12
    $region11: #{spectral_norm_conv2d.3} parent=5 // pred_region
      %s166 = ssub.s32 %s10, 1
      // Predicated region
      $region13: #{spectral_norm_conv2d.3} parent=11 // pred_check
        %p167 = pneg %p43
      $region14: #{spectral_norm_conv2d.3} parent=11 // pred_check_branch
        %169 = sbr.rel (%p167) target = $region16
      $region15: #{spectral_norm_conv2d.3} parent=11 // pred_region
        _
      $region16: #{spectral_norm_conv2d.3} parent=11 // pred_fallthru
        _
      // Predicated region
      $region17: #{spectral_norm_conv2d.3} parent=11 // pred_check
        %p170 = pneg %p124
      $region18: #{spectral_norm_conv2d.3} parent=11 // pred_check_branch
        %172 = sbr.rel (%p170) target = $region20
      $region19: #{spectral_norm_conv2d.3} parent=11 // pred_region
        _
      $region20: #{spectral_norm_conv2d.3} parent=11 // pred_fallthru
        _
    $region12: #{spectral_norm_conv2d.3} parent=5 // pred_fallthru
      _
    %p173 = scmp.lt.s32.totalorder %s10, 2
    // Predicated region
    $region21: #{spectral_norm_conv2d.3} parent=5 // pred_check
      %p174 = pneg %p173
    $region22: #{spectral_norm_conv2d.3} parent=5 // pred_check_branch
      %176 = sbr.rel (%p174) target = $region24
    $region23: #{spectral_norm_conv2d.3} parent=5 // pred_region
      // Predicated region
      $region25: #{spectral_norm_conv2d.3} parent=23 // pred_check
        %p177 = pneg %p65
      $region26: #{spectral_norm_conv2d.3} parent=23 // pred_check_branch
        %179 = sbr.rel (%p177) target = $region28
      $region27: #{spectral_norm_conv2d.3} parent=23 // pred_region
        %s180 = smul.u32 2, %s18
        %s181 = ssub.s32 3, %s180
        %p182 = scmp.lt.s32.totalorder %s181, 2
        %s183 = scalar_select %p182, %s181, 2
        %s184 = smul.u32 4, %s183
        %p185 = scmp.lt.s32.totalorder %s17, 1
        %s186 = scalar_select %p185, %s17, 1
        %p187 = scmp.lt.s32.totalorder %s180, 2
        %s188 = scalar_select %p187, %s180, 2
        %s189 = smul.addr %s186, 3
        %s190 = sadd.s32 %s188, %s189
        %s191 = smul.addr %s190, 4
        %s192 = scalar_lea.vmem %s1, %s191
        %s193 = smul.u32 2, %s18
        %s194 = ssub.s32 3, %s193
        %p195 = scmp.lt.s32.totalorder %s194, 2
        %s196 = scalar_select %p195, %s194, 2
        %s197 = smul.u32 4, %s196
      $region28: #{spectral_norm_conv2d.3} parent=23 // pred_fallthru
        _
      // Predicated region
      $region29: #{spectral_norm_conv2d.3} parent=23 // pred_check
        %p198 = pneg %p97
      $region30: #{spectral_norm_conv2d.3} parent=23 // pred_check_branch
        %200 = sbr.rel (%p198) target = $region32
      $region31: #{spectral_norm_conv2d.3} parent=23 // pred_region
        %s201 = sadd.s32 %s18, 1
        %s202 = smul.u32 %s201, 2
        %p203 = scmp.lt.s32.totalorder %s17, 1
        %s204 = scalar_select %p203, %s17, 1
        %p205 = scmp.lt.s32.totalorder %s202, 2
        %s206 = scalar_select %p205, %s202, 2
        %s207 = smul.addr %s204, 3
        %s208 = sadd.s32 %s206, %s207
        %s209 = smul.addr %s208, 4
        %s210 = scalar_lea.vmem %s2, %s209
        %s211 = sadd.s32 %s18, 1
        %s212 = smul.u32 %s211, 2
      $region32: #{spectral_norm_conv2d.3} parent=23 // pred_fallthru
        _
    $region24: #{spectral_norm_conv2d.3} parent=5 // pred_fallthru
      _
    %p213 = scmp.le.s32.totalorder 1, %s10
    %p214 = scmp.lt.s32.totalorder %s10, 3
    %p215 = pnand %p213, %p214
    %p216 = pneg %p215
    // Predicated region
    $region33: #{spectral_norm_conv2d.3} parent=5 // pred_check
      _
    $region34: #{spectral_norm_conv2d.3} parent=5 // pred_check_branch
      %218 = sbr.rel (%p215) target = $region36
    $region35: #{spectral_norm_conv2d.3} parent=5 // pred_region
      %s219 = ssub.s32 %s10, 1
      %p220 = pneg %p43
      %p221 = pneg %p40
      %s222 = smul.u32 2, %s20
      %s223 = ssub.s32 3, %s222
      %p224 = scmp.lt.s32.totalorder %s223, 2
      %s225 = scalar_select %p224, %s223, 2
      %s226 = smul.u32 4, %s225
      %p227 = scmp.lt.s32.totalorder %s19, 1
      %s228 = scalar_select %p227, %s19, 1
      %p229 = scmp.lt.s32.totalorder %s222, 2
      %s230 = scalar_select %p229, %s222, 2
      %s231 = smul.addr %s228, 3
      %s232 = sadd.s32 %s230, %s231
      %s233 = smul.addr %s232, 4
      %s234 = scalar_lea.vmem %s1, %s233
      %p235 = pneg %p71
      %p236 = pneg %p68
      %s237 = sadd.s32 %s20, 1
      %s238 = smul.u32 %s237, 2
      %p239 = scmp.lt.s32.totalorder %s19, 1
      %s240 = scalar_select %p239, %s19, 1
      %p241 = scmp.lt.s32.totalorder %s238, 2
      %s242 = scalar_select %p241, %s238, 2
      %s243 = smul.addr %s240, 3
      %s244 = sadd.s32 %s242, %s243
      %s245 = smul.addr %s244, 4
      %s246 = scalar_lea.vmem %s2, %s245
      %p247 = pneg %p103
      %p248 = pneg %p100
      %p249 = pneg %p124
      %p250 = pneg %p121
      %p251 = pneg %p152
      %p252 = pneg %p149
      %s253 = smul.u32 2, %s20
      %p254 = scmp.lt.s32.totalorder %s19, 1
      %s255 = scalar_select %p254, %s19, 1
      %p256 = scmp.lt.s32.totalorder %s253, 1
      %s257 = scalar_select %p256, %s253, 1
      %s258 = smul.addr %s255, 2
      %s259 = sadd.s32 %s257, %s258
      %s260 = smul.addr %s259, 4
      %s261 = scalar_lea.vmem %s4, %s260
      %s262 = smul.u32 2, %s20
      %s263 = ssub.s32 3, %s262
      %p264 = scmp.lt.s32.totalorder %s263, 2
      %s265 = scalar_select %p264, %s263, 2
      %s266 = smul.u32 4, %s265
      %p267 = scmp.lt.s32.totalorder %s19, 1
      %s268 = scalar_select %p267, %s19, 1
      %p269 = scmp.lt.s32.totalorder %s262, 2
      %s270 = scalar_select %p269, %s262, 2
      %s271 = smul.addr %s268, 3
      %s272 = sadd.s32 %s270, %s271
      %s273 = smul.addr %s272, 4
      %s274 = scalar_lea.vmem %s1, %s273
      %s275 = smul.u32 2, %s20
      %s276 = ssub.s32 3, %s275
      %p277 = scmp.lt.s32.totalorder %s276, 2
      %s278 = scalar_select %p277, %s276, 2
      %s279 = smul.u32 4, %s278
      %s280 = sadd.s32 %s20, 1
      %s281 = smul.u32 %s280, 2
      %p282 = scmp.lt.s32.totalorder %s19, 1
      %s283 = scalar_select %p282, %s19, 1
      %p284 = scmp.lt.s32.totalorder %s281, 2
      %s285 = scalar_select %p284, %s281, 2
      %s286 = smul.addr %s283, 3
      %s287 = sadd.s32 %s285, %s286
      %s288 = smul.addr %s287, 4
      %s289 = scalar_lea.vmem %s2, %s288
      %s290 = sadd.s32 %s20, 1
      %s291 = smul.u32 %s290, 2
      %s292 = smul.u32 2, %s20
      %p293 = scmp.lt.s32.totalorder %s19, 1
      %s294 = scalar_select %p293, %s19, 1
      %p295 = scmp.lt.s32.totalorder %s292, 1
      %s296 = scalar_select %p295, %s292, 1
      %s297 = smul.addr %s294, 2
      %s298 = sadd.s32 %s296, %s297
      %s299 = smul.addr %s298, 4
      %s300 = scalar_lea.vmem %s4, %s299
      %s301 = smul.u32 2, %s20
      %v302 = vld [vmem:[%s274] sm:$0xff]
      %v303 = vld [vmem:[%s289] sm:$0xf]
      %305 = vst [vmem:[#allocation1] ss:$2 sm:$0xff] %v302
      %v306 = vld.sshfl [vmem:[#allocation1] sm:$0xff pattern:$0x75316420]
      %v307 = vld.sshfl [vmem:[#allocation1 + $0x8] sm:$0xff pattern:$0x75316420]
      %s310 = smul.u32 %s20, 256
      %v311 = vlaneseq
      %v312 = vand.u32 %v311, 127
      %v313 = vadd.s32 %v312, 128
      %v314 = vstv %s310
      %v315 = vadd.s32 %v314, %v312
      %v316 = vadd.s32 %v314, %v313
      %vm317 = vcmp.lt.s32.totalorder %v315, 0
      %v318 = vsub.s32 0, %v315
      %v319 = vsel %vm317, %v318, %v315
      %v320 = vshrl.u32 %v319, 4
      %v321 = vand.u32 %v319, 15
      %v322 = vsub.s32 0, %v321
      %v323 = vsel %vm317, %v322, %v321
      %vm324 = vcmp.lt.s32.totalorder %v316, 0
      %v325 = vsub.s32 0, %v316
      %v326 = vsel %vm324, %v325, %v316
      %v327 = vshrl.u32 %v326, 4
      %v328 = vand.u32 %v326, 15
      %v329 = vsub.s32 0, %v328
      %v330 = vsel %vm324, %v329, %v328
      %vm331 = vcmp.ne.s32.totalorder %v323, 0
      %vm332 = vcmp.ne.s32.totalorder %v330, 0
      %vm333 = vcmp.lt.s32.totalorder %v323, 0
      %vm334 = vcmp.lt.s32.totalorder %v330, 0
      %vm335 = vmand %vm333, %vm331
      %vm336 = vmand %vm334, %vm332
      %v337 = vadd.s32 %v323, 16
      %v338 = vadd.s32 %v330, 16
      %v339 = vsel %vm335, %v337, %v323
      %v340 = vsel %vm336, %v338, %v330
      %v341 = vadd.s32 %v339, 4294967295
      %v342 = vadd.s32 %v340, 4294967295
      %vm343 = vcmp.ge.s32.totalorder %v341, 0
      %vm344 = vcmp.ge.s32.totalorder %v342, 0
      %vm345 = vcmp.lt.s32.totalorder %v341, 16
      %vm346 = vcmp.lt.s32.totalorder %v342, 16
      %vm347 = vmand %vm343, %vm345
      %vm348 = vmand %vm344, %vm346
      %v349 = vsel %vm347, 1, 0
      %v350 = vsel %vm348, 1, 0
      %v351 = vcvt.s32.f32 %v349
      %v352 = vcvt.s32.f32 %v350
      %v353 = vadd.s32 %v339, 1
      %v354 = vadd.s32 %v340, 1
      %vm355 = vcmp.ge.s32.totalorder %v353, 0
      %vm356 = vcmp.ge.s32.totalorder %v354, 0
      %vm357 = vcmp.lt.s32.totalorder %v353, 16
      %vm358 = vcmp.lt.s32.totalorder %v354, 16
      %vm359 = vmand %vm355, %vm357
      %vm360 = vmand %vm356, %vm358
      %v361 = vsel %vm359, 1, 0
      %v362 = vsel %vm360, 1, 0
      %v363 = vcvt.s32.f32 %v361
      %v364 = vcvt.s32.f32 %v362
      %v365 = vmul.f32 %v306, %v351
      %v366 = vmul.f32 %v307, %v352
      %v367 = vld [vmem:[%s0] sm:$0xff]
      %s368 = scalar_lea.vmem %s0, 8
      %v369 = vld [vmem:[%s368] sm:$0xff]
      %371 = vrot.lane.b32.xlu0 %v306, 127
      %v372 = vpop.permute.xlu0 %371
      %373 = vrot.lane.b32.xlu0 %v307, 127
      %v374 = vpop.permute.xlu0 %373
      %375 = vrot.lane.b32.xlu0 %v303, 127
      %v376 = vpop.permute.xlu0 %375
      %vm377 = vcmask 1039360
      %v378 = vsel %vm377, %v372, %v374
      %v379 = vsel %vm377, %v374, %v376
      %vm380 = vcmask 31744
      %v382 = vsel %vm380, %v369, 0
      %vm384 = vcmask 1043456
      %v385 = vsel %vm384, %v378, 0
      %v387 = vsel %vm384, %v379, 0
      %389 = vmatpush.msra.mxu0 0.0
      %390 = vmatpush.msra.mxu0 0.0
      %391 = vmatpush.msra.mxu0 0.0
      %392 = vmatpush.msra.mxu0 0.0
      %393 = vmatpush.msra.mxu0 0.0
      %394 = vmatpush.msra.mxu0 0.0
      %395 = vmatpush.msra.mxu0 0.0
      %396 = vmatpush.msra.mxu0 0.0
      %397 = vmatpush.msra.mxu0 0.0
      %398 = vmatpush.msra.mxu0 0.0
      %399 = vmatpush.msra.mxu0 0.0
      %400 = vmatpush.msra.mxu0 0.0
      %401 = vmatpush.msra.mxu0 0.0
      %402 = vmatpush.msra.mxu0 0.0
      %403 = vmatpush.msra.mxu0 0.0
      %404 = vmatpush.msra.mxu0 %v385
      %405 = vmatmul.f32.gmra.mxu0 %v382
      %v406 = vpop.f32.mrf.mxu0
      %v407 = vadd.f32 0.0, %v406
      %408 = vdwg.mxu0
      %409 = vmatpush.msra.mxu0 0.0
      %410 = vmatpush.msra.mxu0 0.0
      %411 = vmatpush.msra.mxu0 0.0
      %412 = vmatpush.msra.mxu0 0.0
      %413 = vmatpush.msra.mxu0 0.0
      %414 = vmatpush.msra.mxu0 0.0
      %415 = vmatpush.msra.mxu0 0.0
      %416 = vmatpush.msra.mxu0 0.0
      %417 = vmatpush.msra.mxu0 0.0
      %418 = vmatpush.msra.mxu0 0.0
      %419 = vmatpush.msra.mxu0 0.0
      %420 = vmatpush.msra.mxu0 0.0
      %421 = vmatpush.msra.mxu0 0.0
      %422 = vmatpush.msra.mxu0 0.0
      %423 = vmatpush.msra.mxu0 0.0
      %424 = vmatpush.msra.mxu0 %v387
      %425 = vmatmul.f32.gmra.mxu0 %v382
      %v426 = vpop.f32.mrf.mxu0
      %v427 = vadd.f32 0.0, %v426
      %428 = vdwg.mxu0
      %v430 = vsel %vm380, %v367, 0
      %v433 = vsel %vm384, %v365, 0
      %v436 = vsel %vm384, %v366, 0
      %438 = vmatpush.msra.mxu0 0.0
      %439 = vmatpush.msra.mxu0 0.0
      %440 = vmatpush.msra.mxu0 0.0
      %441 = vmatpush.msra.mxu0 0.0
      %442 = vmatpush.msra.mxu0 0.0
      %443 = vmatpush.msra.mxu0 0.0
      %444 = vmatpush.msra.mxu0 0.0
      %445 = vmatpush.msra.mxu0 0.0
      %446 = vmatpush.msra.mxu0 0.0
      %447 = vmatpush.msra.mxu0 0.0
      %448 = vmatpush.msra.mxu0 0.0
      %449 = vmatpush.msra.mxu0 0.0
      %450 = vmatpush.msra.mxu0 0.0
      %451 = vmatpush.msra.mxu0 0.0
      %452 = vmatpush.msra.mxu0 0.0
      %453 = vmatpush.msra.mxu0 %v433
      %454 = vmatmul.f32.gmra.mxu0 %v430
      %v455 = vpop.f32.mrf.mxu0
      %v456 = vadd.f32 %v407, %v455
      %457 = vdwg.mxu0
      %458 = vmatpush.msra.mxu0 0.0
      %459 = vmatpush.msra.mxu0 0.0
      %460 = vmatpush.msra.mxu0 0.0
      %461 = vmatpush.msra.mxu0 0.0
      %462 = vmatpush.msra.mxu0 0.0
      %463 = vmatpush.msra.mxu0 0.0
      %464 = vmatpush.msra.mxu0 0.0
      %465 = vmatpush.msra.mxu0 0.0
      %466 = vmatpush.msra.mxu0 0.0
      %467 = vmatpush.msra.mxu0 0.0
      %468 = vmatpush.msra.mxu0 0.0
      %469 = vmatpush.msra.mxu0 0.0
      %470 = vmatpush.msra.mxu0 0.0
      %471 = vmatpush.msra.mxu0 0.0
      %472 = vmatpush.msra.mxu0 0.0
      %473 = vmatpush.msra.mxu0 %v436
      %474 = vmatmul.f32.gmra.mxu0 %v430
      %v475 = vpop.f32.mrf.mxu0
      %v476 = vadd.f32 %v427, %v475
      %477 = vdwg.mxu0
      %480 = vrot.lane.b32.xlu0 %v363, 2
      %v481 = vpop.permute.xlu0 %480
      %482 = vrot.lane.b32.xlu0 %v364, 2
      %v483 = vpop.permute.xlu0 %482
      %vm484 = vcmask 15360
      %v485 = vsel %vm484, %v481, %v483
      %v489 = vmul.f32 %v306, %v481
      %v490 = vmul.f32 %v307, %v485
      %v491 = vmul.f32 %v303, %v483
      %s492 = scalar_lea.vmem %s0, 16
      %v493 = vld [vmem:[%s492] sm:$0xff]
      %497 = vrot.lane.b32.xlu0 %v489, 126
      %v498 = vpop.permute.xlu0 %497
      %499 = vrot.lane.b32.xlu0 %v490, 126
      %v500 = vpop.permute.xlu0 %499
      %501 = vrot.lane.b32.xlu0 %v491, 126
      %v502 = vpop.permute.xlu0 %501
      %vm503 = vcmask 1031168
      %v504 = vsel %vm503, %v498, %v500
      %v505 = vsel %vm503, %v500, %v502
      %v507 = vsel %vm380, %v493, 0
      %v509 = vsel %vm384, %v504, 0
      %v511 = vsel %vm384, %v505, 0
      %513 = vmatpush.msra.mxu0 0.0
      %514 = vmatpush.msra.mxu0 0.0
      %515 = vmatpush.msra.mxu0 0.0
      %516 = vmatpush.msra.mxu0 0.0
      %517 = vmatpush.msra.mxu0 0.0
      %518 = vmatpush.msra.mxu0 0.0
      %519 = vmatpush.msra.mxu0 0.0
      %520 = vmatpush.msra.mxu0 0.0
      %521 = vmatpush.msra.mxu0 0.0
      %522 = vmatpush.msra.mxu0 0.0
      %523 = vmatpush.msra.mxu0 0.0
      %524 = vmatpush.msra.mxu0 0.0
      %525 = vmatpush.msra.mxu0 0.0
      %526 = vmatpush.msra.mxu0 0.0
      %527 = vmatpush.msra.mxu0 0.0
      %528 = vmatpush.msra.mxu0 %v509
      %529 = vmatmul.f32.gmra.mxu0 %v507
      %v530 = vpop.f32.mrf.mxu0
      %v531 = vadd.f32 0.0, %v530
      %532 = vdwg.mxu0
      %533 = vmatpush.msra.mxu0 0.0
      %534 = vmatpush.msra.mxu0 0.0
      %535 = vmatpush.msra.mxu0 0.0
      %536 = vmatpush.msra.mxu0 0.0
      %537 = vmatpush.msra.mxu0 0.0
      %538 = vmatpush.msra.mxu0 0.0
      %539 = vmatpush.msra.mxu0 0.0
      %540 = vmatpush.msra.mxu0 0.0
      %541 = vmatpush.msra.mxu0 0.0
      %542 = vmatpush.msra.mxu0 0.0
      %543 = vmatpush.msra.mxu0 0.0
      %544 = vmatpush.msra.mxu0 0.0
      %545 = vmatpush.msra.mxu0 0.0
      %546 = vmatpush.msra.mxu0 0.0
      %547 = vmatpush.msra.mxu0 0.0
      %548 = vmatpush.msra.mxu0 %v511
      %549 = vmatmul.f32.gmra.mxu0 %v507
      %v550 = vpop.f32.mrf.mxu0
      %v551 = vadd.f32 0.0, %v550
      %552 = vdwg.mxu0
      %v553 = vadd.f32 %v456, %v531
      %v554 = vadd.f32 %v476, %v551
      %557 = vrot.lane.b32.xlu0 %v351, 16
      %v558 = vpop.permute.xlu0 %557
      %559 = vrot.lane.b32.xlu0 %v352, 16
      %v560 = vpop.permute.xlu0 %559
      %vm561 = vcmask 130048
      %v562 = vsel %vm561, %v558, %v560
      %v566 = vmul.f32 %v306, %v558
      %v567 = vmul.f32 %v307, %v562
      %v568 = vmul.f32 %v303, %v560
      %s569 = scalar_lea.vmem %s0, 24
      %v570 = vld [vmem:[%s569] sm:$0xff]
      %574 = vrot.lane.b32.xlu0 %v566, 112
      %v575 = vpop.permute.xlu0 %574
      %576 = vrot.lane.b32.xlu0 %v567, 112
      %v577 = vpop.permute.xlu0 %576
      %578 = vrot.lane.b32.xlu0 %v568, 112
      %v579 = vpop.permute.xlu0 %578
      %vm580 = vcmask 916480
      %v581 = vsel %vm580, %v575, %v577
      %v582 = vsel %vm580, %v577, %v579
      %v584 = vsel %vm380, %v570, 0
      %v586 = vsel %vm384, %v581, 0
      %v588 = vsel %vm384, %v582, 0
      %590 = vmatpush.msra.mxu0 0.0
      %591 = vmatpush.msra.mxu0 0.0
      %592 = vmatpush.msra.mxu0 0.0
      %593 = vmatpush.msra.mxu0 0.0
      %594 = vmatpush.msra.mxu0 0.0
      %595 = vmatpush.msra.mxu0 0.0
      %596 = vmatpush.msra.mxu0 0.0
      %597 = vmatpush.msra.mxu0 0.0
      %598 = vmatpush.msra.mxu0 0.0
      %599 = vmatpush.msra.mxu0 0.0
      %600 = vmatpush.msra.mxu0 0.0
      %601 = vmatpush.msra.mxu0 0.0
      %602 = vmatpush.msra.mxu0 0.0
      %603 = vmatpush.msra.mxu0 0.0
      %604 = vmatpush.msra.mxu0 0.0
      %605 = vmatpush.msra.mxu0 %v586
      %606 = vmatmul.f32.gmra.mxu0 %v584
      %v607 = vpop.f32.mrf.mxu0
      %v608 = vadd.f32 0.0, %v607
      %609 = vdwg.mxu0
      %610 = vmatpush.msra.mxu0 0.0
      %611 = vmatpush.msra.mxu0 0.0
      %612 = vmatpush.msra.mxu0 0.0
      %613 = vmatpush.msra.mxu0 0.0
      %614 = vmatpush.msra.mxu0 0.0
      %615 = vmatpush.msra.mxu0 0.0
      %616 = vmatpush.msra.mxu0 0.0
      %617 = vmatpush.msra.mxu0 0.0
      %618 = vmatpush.msra.mxu0 0.0
      %619 = vmatpush.msra.mxu0 0.0
      %620 = vmatpush.msra.mxu0 0.0
      %621 = vmatpush.msra.mxu0 0.0
      %622 = vmatpush.msra.mxu0 0.0
      %623 = vmatpush.msra.mxu0 0.0
      %624 = vmatpush.msra.mxu0 0.0
      %625 = vmatpush.msra.mxu0 %v588
      %626 = vmatmul.f32.gmra.mxu0 %v584
      %v627 = vpop.f32.mrf.mxu0
      %v628 = vadd.f32 0.0, %v627
      %629 = vdwg.mxu0
      %v630 = vadd.f32 %v553, %v608
      %v631 = vadd.f32 %v554, %v628
      %s632 = scalar_lea.vmem %s0, 32
      %v633 = vld [vmem:[%s632] sm:$0xff]
      %634 = vrot.lane.b32.xlu0 %v306, 111
      %v635 = vpop.permute.xlu0 %634
      %636 = vrot.lane.b32.xlu0 %v307, 111
      %v637 = vpop.permute.xlu0 %636
      %638 = vrot.lane.b32.xlu0 %v303, 111
      %v639 = vpop.permute.xlu0 %638
      %vm640 = vcmask 908288
      %v641 = vsel %vm640, %v635, %v637
      %v642 = vsel %vm640, %v637, %v639
      %v644 = vsel %vm380, %v633, 0
      %v646 = vsel %vm384, %v641, 0
      %v648 = vsel %vm384, %v642, 0
      %650 = vmatpush.msra.mxu0 0.0
      %651 = vmatpush.msra.mxu0 0.0
      %652 = vmatpush.msra.mxu0 0.0
      %653 = vmatpush.msra.mxu0 0.0
      %654 = vmatpush.msra.mxu0 0.0
      %655 = vmatpush.msra.mxu0 0.0
      %656 = vmatpush.msra.mxu0 0.0
      %657 = vmatpush.msra.mxu0 0.0
      %658 = vmatpush.msra.mxu0 0.0
      %659 = vmatpush.msra.mxu0 0.0
      %660 = vmatpush.msra.mxu0 0.0
      %661 = vmatpush.msra.mxu0 0.0
      %662 = vmatpush.msra.mxu0 0.0
      %663 = vmatpush.msra.mxu0 0.0
      %664 = vmatpush.msra.mxu0 0.0
      %665 = vmatpush.msra.mxu0 %v646
      %666 = vmatmul.f32.gmra.mxu0 %v644
      %v667 = vpop.f32.mrf.mxu0
      %v668 = vadd.f32 0.0, %v667
      %669 = vdwg.mxu0
      %670 = vmatpush.msra.mxu0 0.0
      %671 = vmatpush.msra.mxu0 0.0
      %672 = vmatpush.msra.mxu0 0.0
      %673 = vmatpush.msra.mxu0 0.0
      %674 = vmatpush.msra.mxu0 0.0
      %675 = vmatpush.msra.mxu0 0.0
      %676 = vmatpush.msra.mxu0 0.0
      %677 = vmatpush.msra.mxu0 0.0
      %678 = vmatpush.msra.mxu0 0.0
      %679 = vmatpush.msra.mxu0 0.0
      %680 = vmatpush.msra.mxu0 0.0
      %681 = vmatpush.msra.mxu0 0.0
      %682 = vmatpush.msra.mxu0 0.0
      %683 = vmatpush.msra.mxu0 0.0
      %684 = vmatpush.msra.mxu0 0.0
      %685 = vmatpush.msra.mxu0 %v648
      %686 = vmatmul.f32.gmra.mxu0 %v644
      %v687 = vpop.f32.mrf.mxu0
      %v688 = vadd.f32 0.0, %v687
      %689 = vdwg.mxu0
      %v690 = vadd.f32 %v630, %v668
      %v691 = vadd.f32 %v631, %v688
      %692 = vrot.lane.b32.xlu0 %v363, 18
      %v693 = vpop.permute.xlu0 %692
      %694 = vrot.lane.b32.xlu0 %v364, 18
      %v695 = vpop.permute.xlu0 %694
      %vm696 = vcmask 146432
      %v697 = vsel %vm696, %v693, %v695
      %v701 = vmul.f32 %v306, %v693
      %v702 = vmul.f32 %v307, %v697
      %v703 = vmul.f32 %v303, %v695
      %s704 = scalar_lea.vmem %s0, 40
      %v705 = vld [vmem:[%s704] sm:$0xff]
      %709 = vrot.lane.b32.xlu0 %v701, 110
      %v710 = vpop.permute.xlu0 %709
      %711 = vrot.lane.b32.xlu0 %v702, 110
      %v712 = vpop.permute.xlu0 %711
      %713 = vrot.lane.b32.xlu0 %v703, 110
      %v714 = vpop.permute.xlu0 %713
      %vm715 = vcmask 900096
      %v716 = vsel %vm715, %v710, %v712
      %v717 = vsel %vm715, %v712, %v714
      %v719 = vsel %vm380, %v705, 0
      %v721 = vsel %vm384, %v716, 0
      %v723 = vsel %vm384, %v717, 0
      %725 = vmatpush.msra.mxu0 0.0
      %726 = vmatpush.msra.mxu0 0.0
      %727 = vmatpush.msra.mxu0 0.0
      %728 = vmatpush.msra.mxu0 0.0
      %729 = vmatpush.msra.mxu0 0.0
      %730 = vmatpush.msra.mxu0 0.0
      %731 = vmatpush.msra.mxu0 0.0
      %732 = vmatpush.msra.mxu0 0.0
      %733 = vmatpush.msra.mxu0 0.0
      %734 = vmatpush.msra.mxu0 0.0
      %735 = vmatpush.msra.mxu0 0.0
      %736 = vmatpush.msra.mxu0 0.0
      %737 = vmatpush.msra.mxu0 0.0
      %738 = vmatpush.msra.mxu0 0.0
      %739 = vmatpush.msra.mxu0 0.0
      %740 = vmatpush.msra.mxu0 %v721
      %741 = vmatmul.f32.gmra.mxu0 %v719
      %v742 = vpop.f32.mrf.mxu0
      %v743 = vadd.f32 0.0, %v742
      %744 = vdwg.mxu0
      %745 = vmatpush.msra.mxu0 0.0
      %746 = vmatpush.msra.mxu0 0.0
      %747 = vmatpush.msra.mxu0 0.0
      %748 = vmatpush.msra.mxu0 0.0
      %749 = vmatpush.msra.mxu0 0.0
      %750 = vmatpush.msra.mxu0 0.0
      %751 = vmatpush.msra.mxu0 0.0
      %752 = vmatpush.msra.mxu0 0.0
      %753 = vmatpush.msra.mxu0 0.0
      %754 = vmatpush.msra.mxu0 0.0
      %755 = vmatpush.msra.mxu0 0.0
      %756 = vmatpush.msra.mxu0 0.0
      %757 = vmatpush.msra.mxu0 0.0
      %758 = vmatpush.msra.mxu0 0.0
      %759 = vmatpush.msra.mxu0 0.0
      %760 = vmatpush.msra.mxu0 %v723
      %761 = vmatmul.f32.gmra.mxu0 %v719
      %v762 = vpop.f32.mrf.mxu0
      %v763 = vadd.f32 0.0, %v762
      %764 = vdwg.mxu0
      %v765 = vadd.f32 %v690, %v743
      %v766 = vadd.f32 %v691, %v763
      %767 = vrot.lane.b32.xlu0 %v351, 32
      %v768 = vpop.permute.xlu0 %767
      %769 = vrot.lane.b32.xlu0 %v352, 32
      %v770 = vpop.permute.xlu0 %769
      %vm771 = vcmask 261120
      %v772 = vsel %vm771, %v768, %v770
      %v776 = vmul.f32 %v306, %v768
      %v777 = vmul.f32 %v307, %v772
      %v778 = vmul.f32 %v303, %v770
      %s779 = scalar_lea.vmem %s0, 48
      %v780 = vld [vmem:[%s779] sm:$0xff]
      %784 = vrot.lane.b32.xlu0 %v776, 96
      %v785 = vpop.permute.xlu0 %784
      %786 = vrot.lane.b32.xlu0 %v777, 96
      %v787 = vpop.permute.xlu0 %786
      %788 = vrot.lane.b32.xlu0 %v778, 96
      %v789 = vpop.permute.xlu0 %788
      %vm790 = vcmask 785408
      %v791 = vsel %vm790, %v785, %v787
      %v792 = vsel %vm790, %v787, %v789
      %v794 = vsel %vm380, %v780, 0
      %v796 = vsel %vm384, %v791, 0
      %v798 = vsel %vm384, %v792, 0
      %800 = vmatpush.msra.mxu0 0.0
      %801 = vmatpush.msra.mxu0 0.0
      %802 = vmatpush.msra.mxu0 0.0
      %803 = vmatpush.msra.mxu0 0.0
      %804 = vmatpush.msra.mxu0 0.0
      %805 = vmatpush.msra.mxu0 0.0
      %806 = vmatpush.msra.mxu0 0.0
      %807 = vmatpush.msra.mxu0 0.0
      %808 = vmatpush.msra.mxu0 0.0
      %809 = vmatpush.msra.mxu0 0.0
      %810 = vmatpush.msra.mxu0 0.0
      %811 = vmatpush.msra.mxu0 0.0
      %812 = vmatpush.msra.mxu0 0.0
      %813 = vmatpush.msra.mxu0 0.0
      %814 = vmatpush.msra.mxu0 0.0
      %815 = vmatpush.msra.mxu0 %v796
      %816 = vmatmul.f32.gmra.mxu0 %v794
      %v817 = vpop.f32.mrf.mxu0
      %v818 = vadd.f32 0.0, %v817
      %819 = vdwg.mxu0
      %820 = vmatpush.msra.mxu0 0.0
      %821 = vmatpush.msra.mxu0 0.0
      %822 = vmatpush.msra.mxu0 0.0
      %823 = vmatpush.msra.mxu0 0.0
      %824 = vmatpush.msra.mxu0 0.0
      %825 = vmatpush.msra.mxu0 0.0
      %826 = vmatpush.msra.mxu0 0.0
      %827 = vmatpush.msra.mxu0 0.0
      %828 = vmatpush.msra.mxu0 0.0
      %829 = vmatpush.msra.mxu0 0.0
      %830 = vmatpush.msra.mxu0 0.0
      %831 = vmatpush.msra.mxu0 0.0
      %832 = vmatpush.msra.mxu0 0.0
      %833 = vmatpush.msra.mxu0 0.0
      %834 = vmatpush.msra.mxu0 0.0
      %835 = vmatpush.msra.mxu0 %v798
      %836 = vmatmul.f32.gmra.mxu0 %v794
      %v837 = vpop.f32.mrf.mxu0
      %v838 = vadd.f32 0.0, %v837
      %839 = vdwg.mxu0
      %v840 = vadd.f32 %v765, %v818
      %v841 = vadd.f32 %v766, %v838
      %s842 = scalar_lea.vmem %s0, 56
      %v843 = vld [vmem:[%s842] sm:$0xff]
      %844 = vrot.lane.b32.xlu0 %v306, 95
      %v845 = vpop.permute.xlu0 %844
      %846 = vrot.lane.b32.xlu0 %v307, 95
      %v847 = vpop.permute.xlu0 %846
      %848 = vrot.lane.b32.xlu0 %v303, 95
      %v849 = vpop.permute.xlu0 %848
      %vm850 = vcmask 777216
      %v851 = vsel %vm850, %v845, %v847
      %v852 = vsel %vm850, %v847, %v849
      %v854 = vsel %vm380, %v843, 0
      %v856 = vsel %vm384, %v851, 0
      %v858 = vsel %vm384, %v852, 0
      %860 = vmatpush.msra.mxu0 0.0
      %861 = vmatpush.msra.mxu0 0.0
      %862 = vmatpush.msra.mxu0 0.0
      %863 = vmatpush.msra.mxu0 0.0
      %864 = vmatpush.msra.mxu0 0.0
      %865 = vmatpush.msra.mxu0 0.0
      %866 = vmatpush.msra.mxu0 0.0
      %867 = vmatpush.msra.mxu0 0.0
      %868 = vmatpush.msra.mxu0 0.0
      %869 = vmatpush.msra.mxu0 0.0
      %870 = vmatpush.msra.mxu0 0.0
      %871 = vmatpush.msra.mxu0 0.0
      %872 = vmatpush.msra.mxu0 0.0
      %873 = vmatpush.msra.mxu0 0.0
      %874 = vmatpush.msra.mxu0 0.0
      %875 = vmatpush.msra.mxu0 %v856
      %876 = vmatmul.f32.gmra.mxu0 %v854
      %v877 = vpop.f32.mrf.mxu0
      %v878 = vadd.f32 0.0, %v877
      %879 = vdwg.mxu0
      %880 = vmatpush.msra.mxu0 0.0
      %881 = vmatpush.msra.mxu0 0.0
      %882 = vmatpush.msra.mxu0 0.0
      %883 = vmatpush.msra.mxu0 0.0
      %884 = vmatpush.msra.mxu0 0.0
      %885 = vmatpush.msra.mxu0 0.0
      %886 = vmatpush.msra.mxu0 0.0
      %887 = vmatpush.msra.mxu0 0.0
      %888 = vmatpush.msra.mxu0 0.0
      %889 = vmatpush.msra.mxu0 0.0
      %890 = vmatpush.msra.mxu0 0.0
      %891 = vmatpush.msra.mxu0 0.0
      %892 = vmatpush.msra.mxu0 0.0
      %893 = vmatpush.msra.mxu0 0.0
      %894 = vmatpush.msra.mxu0 0.0
      %895 = vmatpush.msra.mxu0 %v858
      %896 = vmatmul.f32.gmra.mxu0 %v854
      %v897 = vpop.f32.mrf.mxu0
      %v898 = vadd.f32 0.0, %v897
      %899 = vdwg.mxu0
      %v900 = vadd.f32 %v840, %v878
      %v901 = vadd.f32 %v841, %v898
      %902 = vrot.lane.b32.xlu0 %v363, 34
      %v903 = vpop.permute.xlu0 %902
      %904 = vrot.lane.b32.xlu0 %v364, 34
      %v905 = vpop.permute.xlu0 %904
      %vm906 = vcmask 277504
      %v907 = vsel %vm906, %v903, %v905
      %v911 = vmul.f32 %v306, %v903
      %v912 = vmul.f32 %v307, %v907
      %v913 = vmul.f32 %v303, %v905
      %s914 = scalar_lea.vmem %s0, 64
      %v915 = vld [vmem:[%s914] sm:$0xff]
      %919 = vrot.lane.b32.xlu0 %v911, 94
      %v920 = vpop.permute.xlu0 %919
      %921 = vrot.lane.b32.xlu0 %v912, 94
      %v922 = vpop.permute.xlu0 %921
      %923 = vrot.lane.b32.xlu0 %v913, 94
      %v924 = vpop.permute.xlu0 %923
      %vm925 = vcmask 769024
      %v926 = vsel %vm925, %v920, %v922
      %v927 = vsel %vm925, %v922, %v924
      %v929 = vsel %vm380, %v915, 0
      %v931 = vsel %vm384, %v926, 0
      %v933 = vsel %vm384, %v927, 0
      %935 = vmatpush.msra.mxu0 0.0
      %936 = vmatpush.msra.mxu0 0.0
      %937 = vmatpush.msra.mxu0 0.0
      %938 = vmatpush.msra.mxu0 0.0
      %939 = vmatpush.msra.mxu0 0.0
      %940 = vmatpush.msra.mxu0 0.0
      %941 = vmatpush.msra.mxu0 0.0
      %942 = vmatpush.msra.mxu0 0.0
      %943 = vmatpush.msra.mxu0 0.0
      %944 = vmatpush.msra.mxu0 0.0
      %945 = vmatpush.msra.mxu0 0.0
      %946 = vmatpush.msra.mxu0 0.0
      %947 = vmatpush.msra.mxu0 0.0
      %948 = vmatpush.msra.mxu0 0.0
      %949 = vmatpush.msra.mxu0 0.0
      %950 = vmatpush.msra.mxu0 %v931
      %951 = vmatmul.f32.gmra.mxu0 %v929
      %v952 = vpop.f32.mrf.mxu0
      %v953 = vadd.f32 0.0, %v952
      %954 = vdwg.mxu0
      %955 = vmatpush.msra.mxu0 0.0
      %956 = vmatpush.msra.mxu0 0.0
      %957 = vmatpush.msra.mxu0 0.0
      %958 = vmatpush.msra.mxu0 0.0
      %959 = vmatpush.msra.mxu0 0.0
      %960 = vmatpush.msra.mxu0 0.0
      %961 = vmatpush.msra.mxu0 0.0
      %962 = vmatpush.msra.mxu0 0.0
      %963 = vmatpush.msra.mxu0 0.0
      %964 = vmatpush.msra.mxu0 0.0
      %965 = vmatpush.msra.mxu0 0.0
      %966 = vmatpush.msra.mxu0 0.0
      %967 = vmatpush.msra.mxu0 0.0
      %968 = vmatpush.msra.mxu0 0.0
      %969 = vmatpush.msra.mxu0 0.0
      %970 = vmatpush.msra.mxu0 %v933
      %971 = vmatmul.f32.gmra.mxu0 %v929
      %v972 = vpop.f32.mrf.mxu0
      %v973 = vadd.f32 0.0, %v972
      %974 = vdwg.mxu0
      %v975 = vadd.f32 %v900, %v953
      %v976 = vadd.f32 %v901, %v973
      %v977 = vld [vmem:[%s3] sm:$0xff]
      %979 = vset.pattern.permute.xlu0 0
      %980 = vperm.xlu0 %979, %v977
      %v981 = vpop.permute.xlu0 %980
      %v983 = vadd.f32 %v975, %v981
      %v984 = vadd.f32 %v976, %v981
      %v985 = vpack.c.bf16 %v984, %v983
      %986 = vst [vmem:[%s300] sm:$0xff] %v985
      %s987 = smul.u32 2, %s20
      %p988 = scmp.lt.s32.totalorder %s19, 1
      %s989 = scalar_select %p988, %s19, 1
      %p990 = scmp.lt.s32.totalorder %s987, 1
      %s991 = scalar_select %p990, %s987, 1
      %s992 = smul.addr %s989, 2
      %s993 = sadd.s32 %s991, %s992
      %s994 = smul.addr %s993, 4
      %s995 = scalar_lea.vmem %s4, %s994
      // Predicated region
      $region37: #{spectral_norm_conv2d.3} parent=35 // pred_check
        %p996 = pneg %p149
      $region38: #{spectral_norm_conv2d.3} parent=35 // pred_check_branch
        %998 = sbr.rel (%p996) target = $region40
      $region39: #{spectral_norm_conv2d.3} parent=35 // pred_region
        %s999 = smul.u32 2, %s20
      $region40: #{spectral_norm_conv2d.3} parent=35 // pred_fallthru
        _
    $region36: #{spectral_norm_conv2d.3} parent=5 // pred_fallthru
      _
    %p1000 = scmp.le.s32.totalorder 2, %s10
    // Predicated region
    $region41: #{spectral_norm_conv2d.3} parent=5 // pred_check
      %p1001 = pneg %p1000
    $region42: #{spectral_norm_conv2d.3} parent=5 // pred_check_branch
      %1003 = sbr.rel (%p1001) target = $region44
    $region43: #{spectral_norm_conv2d.3} parent=5 // pred_region
      %s1004 = ssub.s32 %s10, 2
      // Predicated region
      $region45: #{spectral_norm_conv2d.3} parent=43 // pred_check
        %p1005 = pneg %p155
      $region46: #{spectral_norm_conv2d.3} parent=43 // pred_check_branch
        %1007 = sbr.rel (%p1005) target = $region48
      $region47: #{spectral_norm_conv2d.3} parent=43 // pred_region
        %s1008 = smul.u32 2, %s22
        %p1009 = scmp.lt.s32.totalorder %s21, 1
        %s1010 = scalar_select %p1009, %s21, 1
        %p1011 = scmp.lt.s32.totalorder %s1008, 1
        %s1012 = scalar_select %p1011, %s1008, 1
        %s1013 = smul.addr %s1010, 2
        %s1014 = sadd.s32 %s1012, %s1013
        %s1015 = smul.addr %s1014, 4
        %s1016 = scalar_lea.vmem %s4, %s1015
      $region48: #{spectral_norm_conv2d.3} parent=43 // pred_fallthru
        _
    $region44: #{spectral_norm_conv2d.3} parent=5 // pred_fallthru
      _
  $region6: #{spectral_norm_conv2d.3} parent=0 // loop_footer
    %s14 = sadd.s32 1, %s10
  $region7: #{spectral_norm_conv2d.3} parent=0 // loop_footer_branch
    %9 = sbr.rel target = $region3
  $region8: #{spectral_norm_conv2d.3} parent=0 // loop_exit
    _

</llo_original>
